<compile_context>
chip_gen: v7x
topology: tpu7x:2x2x1
jax: 0.10.0
libtpu: 0.0.40
codegen_flags: <defaults>
</compile_context>

<pallas_src>
import functools

import jax
import jax.numpy as jnp
from jax.experimental import pallas as pl
from jax.experimental.pallas import tpu as pltpu

PRIMITIVES = (
    "none",             # Zero()
    "add",              # Identity()
    "subtract",         # -Identity()
    "linear",           # Linear(C, C)
    "linear_relu",      # ReLU(Linear(C, C))
    "linear_tanh",      # Tanh(Linear(C, C))
    "linear_logistic",  # Sigmoid(Linear(C, C))
    "linear_exp",       # Exp(Linear(C, C))
)
PRIM_IDX = {p: i for i, p in enumerate(PRIMITIVES)}
LINEAR_PRIMS = tuple(p for p in PRIMITIVES if p.startswith("linear"))
N_LIN = len(LINEAR_PRIMS)


def _edge_offsets(steps, n_in):
    offs, off = [], 0
    for i in range(steps):
        offs.append(off)
        off += n_in + i
    return offs


def _consuming_steps(j, steps, n_in):
    """Steps i whose MixedOp sum includes state j (trace-time constant)."""
    return [i for i in range(steps) if j < n_in + i]


def _apply_nonlin(prim, z):
    if prim == "linear":
        return z
    if prim == "linear_relu":
        return jnp.maximum(z, 0.0)
    if prim == "linear_tanh":
        return jnp.tanh(z)
    if prim == "linear_logistic":
        return jax.nn.sigmoid(z)
    return jnp.exp(z)  # "linear_exp"


def _cell_kernel(alpha_ref, x_ref, w_ref, b_ref, out_ref, *, steps, n_in, C):
    """One batch tile of the full Cell forward (all steps/edges/primitives fused)."""
    TB = x_ref.shape[1]
    LINW = N_LIN * C
    offsets = _edge_offsets(steps, n_in)

    # Per-step accumulators (trace-time list; pinned to f32).
    accs = [jnp.zeros((TB, C), jnp.float32) for _ in range(steps)]

    def consume(j, h):
        """Add state j's contribution to every step that consumes it."""
        consuming = _consuming_steps(j, steps, n_in)
        if not consuming:
            return
        # One wide MXU matmul covering all consuming edges x all linear prims.
        # NOTE: on v6e/v7x the matmul inputs could be cast to bfloat16 (keeping
        # f32 accumulation + f32 nonlinearities) for MXU-native throughput once
        # a looser numeric tolerance is acceptable.
        z = jnp.dot(h, w_ref[j], preferred_element_type=jnp.float32) + b_ref[j]
        for idx, i in enumerate(consuming):
            e = offsets[i] + j
            base = idx * LINW
            # "none" (Zero) contributes exact zeros -> skipped.
            # add / subtract identities folded into one scalar from SMEM.
            a_id = alpha_ref[e, PRIM_IDX["add"]] - alpha_ref[e, PRIM_IDX["subtract"]]
            contrib = a_id * h
            for lp, prim in enumerate(LINEAR_PRIMS):
                zc = z[:, base + lp * C: base + (lp + 1) * C]
                contrib = contrib + alpha_ref[e, PRIM_IDX[prim]] * _apply_nonlin(prim, zc)
            accs[i] = accs[i] + contrib

    # Input states feed every step's accumulator.
    for j in range(n_in):
        consume(j, x_ref[j])

    # Intermediate states: finalize step i, write it straight to its output
    # column slice (early writeback), then feed it into the remaining steps.
    for i in range(steps):
        s = accs[i]
        out_ref[:, pl.ds(i * C, C)] = s.astype(out_ref.dtype)
        if i < steps - 1:
            consume(n_in + i, s)


def _pack_state_weights(Ws, bs, *, steps, n_in, C):
    """Repack per-edge/per-primitive weights into one lane-concatenated slab per state.

    Ws: (E, N_LIN, C, C) -> (n_in+steps-1, C, steps*N_LIN*C)  (zero-padded)
    bs: (E, N_LIN, 1, C) -> (n_in+steps-1, 1, steps*N_LIN*C)
    """
    E = Ws.shape[0]
    LINW = N_LIN * C
    TOT = steps * LINW
    # Per edge: primitives concatenated along the output dim.
    W_cat = jnp.transpose(Ws, (0, 2, 1, 3)).reshape(E, C, LINW)
    b_cat = jnp.transpose(bs, (0, 2, 1, 3)).reshape(E, 1, LINW)
    offsets = _edge_offsets(steps, n_in)

    W_states, b_states = [], []
    n_consumed = n_in + steps - 1  # the last state is never consumed
    for j in range(n_consumed):
        consuming = _consuming_steps(j, steps, n_in)
        wj = jnp.concatenate([W_cat[offsets[i] + j] for i in consuming], axis=1)
        bj = jnp.concatenate([b_cat[offsets[i] + j] for i in consuming], axis=1)
        pad = TOT - wj.shape[1]
        if pad:  # zero-pad so every state has the same slab width (unused cols)
            wj = jnp.pad(wj, ((0, 0), (0, pad)))
            bj = jnp.pad(bj, ((0, 0), (0, pad)))
        W_states.append(wj)
        b_states.append(bj)
    return jnp.stack(W_states), jnp.stack(b_states)


def cell_forward(input_states, alphas, Ws, bs, *, steps, block_b=None):
    """input_states: (n_in, B, C) f32; alphas: (E, P) f32;
    Ws: (E, N_LIN, C, C); bs: (E, N_LIN, 1, C)."""
    n_in, B, C = input_states.shape
    Wp, bp = _pack_state_weights(Ws, bs, steps=steps, n_in=n_in, C=C)
    n_cons, _, TOT = Wp.shape

    # Batch tile: a multiple of 8 sublanes (or the full batch).
    if block_b is None:
        block_b = min(B, 512)
    if B % block_b != 0:
        block_b = B
    TB = block_b
    assert TB == B or TB % 8 == 0, "batch tile must be a multiple of 8 (or the full batch)"
    grid = (B // TB,)

    kernel = functools.partial(_cell_kernel, steps=steps, n_in=n_in, C=C)
    # TODO(synk): for large C (e.g. C>=512 on v7x with 64 MiB VMEM) stream the
    # per-state weight slabs via the grid/index_map (or manual DMA) instead of
    # keeping the full packed array VMEM-resident, and set vmem_limit_bytes.
    return pl.pallas_call(
        kernel,
        out_shape=jax.ShapeDtypeStruct((B, steps * C), jnp.float32),
        grid_spec=pltpu.PrefetchScalarGridSpec(
            num_scalar_prefetch=1,          # alphas -> SMEM scalar table
            grid=grid,
            in_specs=[
                pl.BlockSpec((n_in, TB, C), lambda b, a: (0, b, 0)),     # states, B-tiled
                pl.BlockSpec((n_cons, C, TOT), lambda b, a: (0, 0, 0)),  # packed weights (resident)
                pl.BlockSpec((n_cons, 1, TOT), lambda b, a: (0, 0, 0)),  # packed biases (resident)
            ],
            out_specs=pl.BlockSpec((TB, steps * C), lambda b, a: (b, 0)),
        ),
        compiler_params=pltpu.CompilerParams(
            dimension_semantics=("parallel",)),
    )(alphas, input_states, Wp, bp)


def cell_reference(input_states, alphas, Ws, bs, *, steps):
    """Pure-JAX reference mirroring Cell.forward / MixedOp.forward semantics."""
    n_in, B, C = input_states.shape
    states = [input_states[i] for i in range(n_in)]
    offset = 0
    for _ in range(steps):
        s = jnp.zeros((B, C), jnp.float32)
        for j, h in enumerate(states):
            e = offset + j
            acc = jnp.zeros((B, C), jnp.float32)
            lin = 0
            for p, prim in enumerate(PRIMITIVES):
                a = alphas[e, p]
                if prim == "none":
                    continue
                if prim == "add":
                    val = h
                elif prim == "subtract":
                    val = -h
                else:
                    z = h @ Ws[e, lin] + bs[e, lin]
                    lin += 1
                    val = _apply_nonlin(prim, z)
                acc = acc + a * val
            s = s + acc
        offset += len(states)
        states.append(s)
    return jnp.concatenate(states[-steps:], axis=1)


if __name__ == "__main__":
    # Small config consistent with Cell(steps, n_input_states, C)
    steps = 3
    n_input_states = 2
    B, C = 64, 8
    num_edges = sum(n_input_states + i for i in range(steps))   # 9
    num_prims = len(PRIMITIVES)                                  # 8

    key = jax.random.PRNGKey(0)
    k_x, k_a, k_w, k_b = jax.random.split(key, 4)

    input_states = jax.random.normal(k_x, (n_input_states, B, C), jnp.float32)
    # architecture weights: softmax over primitives per edge (as DARTS does)
    alphas = jax.nn.softmax(
        jax.random.normal(k_a, (num_edges, num_prims), jnp.float32), axis=-1)
    # modest scales keep the chained linear_exp primitive well inside f32 range
    Ws = 0.1 * jax.random.normal(k_w, (num_edges, N_LIN, C, C), jnp.float32)
    bs = 0.05 * jax.random.normal(k_b, (num_edges, N_LIN, 1, C), jnp.float32)

    out = cell_forward(input_states, alphas, Ws, bs, steps=steps, block_b=32)
    out = jax.block_until_ready(out)

    ref = cell_reference(input_states, alphas, Ws, bs, steps=steps)
    assert out.shape == (B, steps * C), out.shape
    assert jnp.allclose(out, ref, atol=1e-4, rtol=1e-4), float(jnp.max(jnp.abs(out - ref)))
    print("KERNEL_OK")
</pallas_src>

<mosaic_0001>
module attributes {stable_mosaic.version = 11 : i64} {
  func.func @_cell_kernel(%arg0: i32, %arg1: memref<9x8xf32, #tpu.memory_space<smem>>, %arg2: memref<2x32x8xf32, #tpu.memory_space<vmem>>, %arg3: memref<4x8x120xf32, #tpu.memory_space<vmem>>, %arg4: memref<4x1x120xf32, #tpu.memory_space<vmem>>, %arg5: memref<32x24xf32, #tpu.memory_space<vmem>>) attributes {dimension_semantics = [#tpu.dimension_semantics<parallel>], iteration_bounds = array<i64: 2>, scalar_prefetch = 1 : i64, scratch_operands = 0 : i64, tpu.core_type = #tpu.core_type<tc>, window_params = [{transform_indices = @transform_0, window_bounds = array<i64: 2, 32, 8>}, {pipeline_mode = #tpu.pipeline_mode<synchronous>, transform_indices = @transform_1, window_bounds = array<i64: 4, 8, 120>}, {pipeline_mode = #tpu.pipeline_mode<synchronous>, transform_indices = @transform_2, window_bounds = array<i64: 4, 1, 120>}, {transform_indices = @transform_3, window_bounds = array<i64: 32, 24>}]} {
    %cst = arith.constant 0.000000e+00 : f32
    %0 = vector.broadcast %cst : f32 to vector<32x8xf32>
    %cst_0 = arith.constant 0.000000e+00 : f32
    %1 = vector.broadcast %cst_0 : f32 to vector<32x8xf32>
    %cst_1 = arith.constant 0.000000e+00 : f32
    %2 = vector.broadcast %cst_1 : f32 to vector<32x8xf32>
    %c0 = arith.constant 0 : index
    %c0_2 = arith.constant 0 : index
    %c0_3 = arith.constant 0 : index
    %3 = vector.load %arg2[%c0, %c0_2, %c0_3] : memref<2x32x8xf32, #tpu.memory_space<vmem>>, vector<1x32x8xf32>
    %4 = vector.shape_cast %3 : vector<1x32x8xf32> to vector<32x8xf32>
    %c0_4 = arith.constant 0 : index
    %c0_5 = arith.constant 0 : index
    %c0_6 = arith.constant 0 : index
    %5 = vector.load %arg3[%c0_4, %c0_5, %c0_6] : memref<4x8x120xf32, #tpu.memory_space<vmem>>, vector<1x8x120xf32>
    %6 = vector.shape_cast %5 : vector<1x8x120xf32> to vector<8x120xf32>
    %cst_7 = arith.constant dense<0.000000e+00> : vector<32x120xf32>
    %7 = tpu.matmul %4, %6, %cst_7 {dimension_numbers = #tpu.dot_dimension_numbers<[1], [0], [0], [1], [0, 0, 1, 1], [], []>} : vector<32x8xf32>, vector<8x120xf32>, vector<32x120xf32> -> vector<32x120xf32>
    %c0_8 = arith.constant 0 : index
    %c0_9 = arith.constant 0 : index
    %c0_10 = arith.constant 0 : index
    %8 = vector.load %arg4[%c0_8, %c0_9, %c0_10] : memref<4x1x120xf32, #tpu.memory_space<vmem>>, vector<1x1x120xf32>
    %9 = vector.shape_cast %8 : vector<1x1x120xf32> to vector<1x120xf32>
    %10 = vector.broadcast %9 : vector<1x120xf32> to vector<32x120xf32>
    %11 = arith.addf %7, %10 : vector<32x120xf32>
    %c0_11 = arith.constant 0 : index
    %c1 = arith.constant 1 : index
    %12 = memref.load %arg1[%c0_11, %c1] : memref<9x8xf32, #tpu.memory_space<smem>>
    %c0_12 = arith.constant 0 : index
    %c2 = arith.constant 2 : index
    %13 = memref.load %arg1[%c0_12, %c2] : memref<9x8xf32, #tpu.memory_space<smem>>
    %14 = arith.subf %12, %13 : f32
    %15 = vector.broadcast %14 : f32 to vector<32x8xf32>
    %16 = arith.mulf %15, %4 : vector<32x8xf32>
    %17 = vector.extract_strided_slice %11 {offsets = [0, 0], sizes = [32, 8], strides = [1, 1]} : vector<32x120xf32> to vector<32x8xf32>
    %c0_13 = arith.constant 0 : index
    %c3 = arith.constant 3 : index
    %18 = memref.load %arg1[%c0_13, %c3] : memref<9x8xf32, #tpu.memory_space<smem>>
    %19 = vector.broadcast %18 : f32 to vector<32x8xf32>
    %20 = arith.mulf %19, %17 : vector<32x8xf32>
    %21 = arith.addf %16, %20 : vector<32x8xf32>
    %22 = vector.extract_strided_slice %11 {offsets = [0, 8], sizes = [32, 8], strides = [1, 1]} : vector<32x120xf32> to vector<32x8xf32>
    %c0_14 = arith.constant 0 : index
    %c4 = arith.constant 4 : index
    %23 = memref.load %arg1[%c0_14, %c4] : memref<9x8xf32, #tpu.memory_space<smem>>
    %cst_15 = arith.constant 0.000000e+00 : f32
    %24 = vector.broadcast %cst_15 : f32 to vector<32x8xf32>
    %25 = arith.maximumf %22, %24 : vector<32x8xf32>
    %26 = vector.broadcast %23 : f32 to vector<32x8xf32>
    %27 = arith.mulf %26, %25 : vector<32x8xf32>
    %28 = arith.addf %21, %27 : vector<32x8xf32>
    %29 = vector.extract_strided_slice %11 {offsets = [0, 16], sizes = [32, 8], strides = [1, 1]} : vector<32x120xf32> to vector<32x8xf32>
    %c0_16 = arith.constant 0 : index
    %c5 = arith.constant 5 : index
    %30 = memref.load %arg1[%c0_16, %c5] : memref<9x8xf32, #tpu.memory_space<smem>>
    %31 = math.tanh %29 : vector<32x8xf32>
    %32 = vector.broadcast %30 : f32 to vector<32x8xf32>
    %33 = arith.mulf %32, %31 : vector<32x8xf32>
    %34 = arith.addf %28, %33 : vector<32x8xf32>
    %35 = vector.extract_strided_slice %11 {offsets = [0, 24], sizes = [32, 8], strides = [1, 1]} : vector<32x120xf32> to vector<32x8xf32>
    %c0_17 = arith.constant 0 : index
    %c6 = arith.constant 6 : index
    %36 = memref.load %arg1[%c0_17, %c6] : memref<9x8xf32, #tpu.memory_space<smem>>
    %37 = arith.negf %35 : vector<32x8xf32>
    %38 = math.exp %37 : vector<32x8xf32>
    %cst_18 = arith.constant 1.000000e+00 : f32
    %39 = vector.broadcast %cst_18 : f32 to vector<32x8xf32>
    %40 = arith.addf %39, %38 : vector<32x8xf32>
    %41 = arith.divf %39, %40 : vector<32x8xf32>
    %42 = vector.broadcast %36 : f32 to vector<32x8xf32>
    %43 = arith.mulf %42, %41 : vector<32x8xf32>
    %44 = arith.addf %34, %43 : vector<32x8xf32>
    %45 = vector.extract_strided_slice %11 {offsets = [0, 32], sizes = [32, 8], strides = [1, 1]} : vector<32x120xf32> to vector<32x8xf32>
    %c0_19 = arith.constant 0 : index
    %c7 = arith.constant 7 : index
    %46 = memref.load %arg1[%c0_19, %c7] : memref<9x8xf32, #tpu.memory_space<smem>>
    %47 = math.exp %45 : vector<32x8xf32>
    %48 = vector.broadcast %46 : f32 to vector<32x8xf32>
    %49 = arith.mulf %48, %47 : vector<32x8xf32>
    %50 = arith.addf %44, %49 : vector<32x8xf32>
    %51 = arith.addf %0, %50 : vector<32x8xf32>
    %c2_20 = arith.constant 2 : index
    %c1_21 = arith.constant 1 : index
    %52 = memref.load %arg1[%c2_20, %c1_21] : memref<9x8xf32, #tpu.memory_space<smem>>
    %c2_22 = arith.constant 2 : index
    %c2_23 = arith.constant 2 : index
    %53 = memref.load %arg1[%c2_22, %c2_23] : memref<9x8xf32, #tpu.memory_space<smem>>
    %54 = arith.subf %52, %53 : f32
    %55 = vector.broadcast %54 : f32 to vector<32x8xf32>
    %56 = arith.mulf %55, %4 : vector<32x8xf32>
    %57 = vector.extract_strided_slice %11 {offsets = [0, 40], sizes = [32, 8], strides = [1, 1]} : vector<32x120xf32> to vector<32x8xf32>
    %c2_24 = arith.constant 2 : index
    %c3_25 = arith.constant 3 : index
    %58 = memref.load %arg1[%c2_24, %c3_25] : memref<9x8xf32, #tpu.memory_space<smem>>
    %59 = vector.broadcast %58 : f32 to vector<32x8xf32>
    %60 = arith.mulf %59, %57 : vector<32x8xf32>
    %61 = arith.addf %56, %60 : vector<32x8xf32>
    %62 = vector.extract_strided_slice %11 {offsets = [0, 48], sizes = [32, 8], strides = [1, 1]} : vector<32x120xf32> to vector<32x8xf32>
    %c2_26 = arith.constant 2 : index
    %c4_27 = arith.constant 4 : index
    %63 = memref.load %arg1[%c2_26, %c4_27] : memref<9x8xf32, #tpu.memory_space<smem>>
    %cst_28 = arith.constant 0.000000e+00 : f32
    %64 = vector.broadcast %cst_28 : f32 to vector<32x8xf32>
    %65 = arith.maximumf %62, %64 : vector<32x8xf32>
    %66 = vector.broadcast %63 : f32 to vector<32x8xf32>
    %67 = arith.mulf %66, %65 : vector<32x8xf32>
    %68 = arith.addf %61, %67 : vector<32x8xf32>
    %69 = vector.extract_strided_slice %11 {offsets = [0, 56], sizes = [32, 8], strides = [1, 1]} : vector<32x120xf32> to vector<32x8xf32>
    %c2_29 = arith.constant 2 : index
    %c5_30 = arith.constant 5 : index
    %70 = memref.load %arg1[%c2_29, %c5_30] : memref<9x8xf32, #tpu.memory_space<smem>>
    %71 = math.tanh %69 : vector<32x8xf32>
    %72 = vector.broadcast %70 : f32 to vector<32x8xf32>
    %73 = arith.mulf %72, %71 : vector<32x8xf32>
    %74 = arith.addf %68, %73 : vector<32x8xf32>
    %75 = vector.extract_strided_slice %11 {offsets = [0, 64], sizes = [32, 8], strides = [1, 1]} : vector<32x120xf32> to vector<32x8xf32>
    %c2_31 = arith.constant 2 : index
    %c6_32 = arith.constant 6 : index
    %76 = memref.load %arg1[%c2_31, %c6_32] : memref<9x8xf32, #tpu.memory_space<smem>>
    %77 = arith.negf %75 : vector<32x8xf32>
    %78 = math.exp %77 : vector<32x8xf32>
    %cst_33 = arith.constant 1.000000e+00 : f32
    %79 = vector.broadcast %cst_33 : f32 to vector<32x8xf32>
    %80 = arith.addf %79, %78 : vector<32x8xf32>
    %81 = arith.divf %79, %80 : vector<32x8xf32>
    %82 = vector.broadcast %76 : f32 to vector<32x8xf32>
    %83 = arith.mulf %82, %81 : vector<32x8xf32>
    %84 = arith.addf %74, %83 : vector<32x8xf32>
    %85 = vector.extract_strided_slice %11 {offsets = [0, 72], sizes = [32, 8], strides = [1, 1]} : vector<32x120xf32> to vector<32x8xf32>
    %c2_34 = arith.constant 2 : index
    %c7_35 = arith.constant 7 : index
    %86 = memref.load %arg1[%c2_34, %c7_35] : memref<9x8xf32, #tpu.memory_space<smem>>
    %87 = math.exp %85 : vector<32x8xf32>
    %88 = vector.broadcast %86 : f32 to vector<32x8xf32>
    %89 = arith.mulf %88, %87 : vector<32x8xf32>
    %90 = arith.addf %84, %89 : vector<32x8xf32>
    %91 = arith.addf %1, %90 : vector<32x8xf32>
    %c5_36 = arith.constant 5 : index
    %c1_37 = arith.constant 1 : index
    %92 = memref.load %arg1[%c5_36, %c1_37] : memref<9x8xf32, #tpu.memory_space<smem>>
    %c5_38 = arith.constant 5 : index
    %c2_39 = arith.constant 2 : index
    %93 = memref.load %arg1[%c5_38, %c2_39] : memref<9x8xf32, #tpu.memory_space<smem>>
    %94 = arith.subf %92, %93 : f32
    %95 = vector.broadcast %94 : f32 to vector<32x8xf32>
    %96 = arith.mulf %95, %4 : vector<32x8xf32>
    %97 = vector.extract_strided_slice %11 {offsets = [0, 80], sizes = [32, 8], strides = [1, 1]} : vector<32x120xf32> to vector<32x8xf32>
    %c5_40 = arith.constant 5 : index
    %c3_41 = arith.constant 3 : index
    %98 = memref.load %arg1[%c5_40, %c3_41] : memref<9x8xf32, #tpu.memory_space<smem>>
    %99 = vector.broadcast %98 : f32 to vector<32x8xf32>
    %100 = arith.mulf %99, %97 : vector<32x8xf32>
    %101 = arith.addf %96, %100 : vector<32x8xf32>
    %102 = vector.extract_strided_slice %11 {offsets = [0, 88], sizes = [32, 8], strides = [1, 1]} : vector<32x120xf32> to vector<32x8xf32>
    %c5_42 = arith.constant 5 : index
    %c4_43 = arith.constant 4 : index
    %103 = memref.load %arg1[%c5_42, %c4_43] : memref<9x8xf32, #tpu.memory_space<smem>>
    %cst_44 = arith.constant 0.000000e+00 : f32
    %104 = vector.broadcast %cst_44 : f32 to vector<32x8xf32>
    %105 = arith.maximumf %102, %104 : vector<32x8xf32>
    %106 = vector.broadcast %103 : f32 to vector<32x8xf32>
    %107 = arith.mulf %106, %105 : vector<32x8xf32>
    %108 = arith.addf %101, %107 : vector<32x8xf32>
    %109 = vector.extract_strided_slice %11 {offsets = [0, 96], sizes = [32, 8], strides = [1, 1]} : vector<32x120xf32> to vector<32x8xf32>
    %c5_45 = arith.constant 5 : index
    %c5_46 = arith.constant 5 : index
    %110 = memref.load %arg1[%c5_45, %c5_46] : memref<9x8xf32, #tpu.memory_space<smem>>
    %111 = math.tanh %109 : vector<32x8xf32>
    %112 = vector.broadcast %110 : f32 to vector<32x8xf32>
    %113 = arith.mulf %112, %111 : vector<32x8xf32>
    %114 = arith.addf %108, %113 : vector<32x8xf32>
    %115 = vector.extract_strided_slice %11 {offsets = [0, 104], sizes = [32, 8], strides = [1, 1]} : vector<32x120xf32> to vector<32x8xf32>
    %c5_47 = arith.constant 5 : index
    %c6_48 = arith.constant 6 : index
    %116 = memref.load %arg1[%c5_47, %c6_48] : memref<9x8xf32, #tpu.memory_space<smem>>
    %117 = arith.negf %115 : vector<32x8xf32>
    %118 = math.exp %117 : vector<32x8xf32>
    %cst_49 = arith.constant 1.000000e+00 : f32
    %119 = vector.broadcast %cst_49 : f32 to vector<32x8xf32>
    %120 = arith.addf %119, %118 : vector<32x8xf32>
    %121 = arith.divf %119, %120 : vector<32x8xf32>
    %122 = vector.broadcast %116 : f32 to vector<32x8xf32>
    %123 = arith.mulf %122, %121 : vector<32x8xf32>
    %124 = arith.addf %114, %123 : vector<32x8xf32>
    %125 = vector.extract_strided_slice %11 {offsets = [0, 112], sizes = [32, 8], strides = [1, 1]} : vector<32x120xf32> to vector<32x8xf32>
    %c5_50 = arith.constant 5 : index
    %c7_51 = arith.constant 7 : index
    %126 = memref.load %arg1[%c5_50, %c7_51] : memref<9x8xf32, #tpu.memory_space<smem>>
    %127 = math.exp %125 : vector<32x8xf32>
    %128 = vector.broadcast %126 : f32 to vector<32x8xf32>
    %129 = arith.mulf %128, %127 : vector<32x8xf32>
    %130 = arith.addf %124, %129 : vector<32x8xf32>
    %131 = arith.addf %2, %130 : vector<32x8xf32>
    %c1_52 = arith.constant 1 : index
    %c0_53 = arith.constant 0 : index
    %c0_54 = arith.constant 0 : index
    %132 = vector.load %arg2[%c1_52, %c0_53, %c0_54] : memref<2x32x8xf32, #tpu.memory_space<vmem>>, vector<1x32x8xf32>
    %133 = vector.shape_cast %132 : vector<1x32x8xf32> to vector<32x8xf32>
    %c1_55 = arith.constant 1 : index
    %c0_56 = arith.constant 0 : index
    %c0_57 = arith.constant 0 : index
    %134 = vector.load %arg3[%c1_55, %c0_56, %c0_57] : memref<4x8x120xf32, #tpu.memory_space<vmem>>, vector<1x8x120xf32>
    %135 = vector.shape_cast %134 : vector<1x8x120xf32> to vector<8x120xf32>
    %cst_58 = arith.constant dense<0.000000e+00> : vector<32x120xf32>
    %136 = tpu.matmul %133, %135, %cst_58 {dimension_numbers = #tpu.dot_dimension_numbers<[1], [0], [0], [1], [0, 0, 1, 1], [], []>} : vector<32x8xf32>, vector<8x120xf32>, vector<32x120xf32> -> vector<32x120xf32>
    %c1_59 = arith.constant 1 : index
    %c0_60 = arith.constant 0 : index
    %c0_61 = arith.constant 0 : index
    %137 = vector.load %arg4[%c1_59, %c0_60, %c0_61] : memref<4x1x120xf32, #tpu.memory_space<vmem>>, vector<1x1x120xf32>
    %138 = vector.shape_cast %137 : vector<1x1x120xf32> to vector<1x120xf32>
    %139 = vector.broadcast %138 : vector<1x120xf32> to vector<32x120xf32>
    %140 = arith.addf %136, %139 : vector<32x120xf32>
    %c1_62 = arith.constant 1 : index
    %c1_63 = arith.constant 1 : index
    %141 = memref.load %arg1[%c1_62, %c1_63] : memref<9x8xf32, #tpu.memory_space<smem>>
    %c1_64 = arith.constant 1 : index
    %c2_65 = arith.constant 2 : index
    %142 = memref.load %arg1[%c1_64, %c2_65] : memref<9x8xf32, #tpu.memory_space<smem>>
    %143 = arith.subf %141, %142 : f32
    %144 = vector.broadcast %143 : f32 to vector<32x8xf32>
    %145 = arith.mulf %144, %133 : vector<32x8xf32>
    %146 = vector.extract_strided_slice %140 {offsets = [0, 0], sizes = [32, 8], strides = [1, 1]} : vector<32x120xf32> to vector<32x8xf32>
    %c1_66 = arith.constant 1 : index
    %c3_67 = arith.constant 3 : index
    %147 = memref.load %arg1[%c1_66, %c3_67] : memref<9x8xf32, #tpu.memory_space<smem>>
    %148 = vector.broadcast %147 : f32 to vector<32x8xf32>
    %149 = arith.mulf %148, %146 : vector<32x8xf32>
    %150 = arith.addf %145, %149 : vector<32x8xf32>
    %151 = vector.extract_strided_slice %140 {offsets = [0, 8], sizes = [32, 8], strides = [1, 1]} : vector<32x120xf32> to vector<32x8xf32>
    %c1_68 = arith.constant 1 : index
    %c4_69 = arith.constant 4 : index
    %152 = memref.load %arg1[%c1_68, %c4_69] : memref<9x8xf32, #tpu.memory_space<smem>>
    %cst_70 = arith.constant 0.000000e+00 : f32
    %153 = vector.broadcast %cst_70 : f32 to vector<32x8xf32>
    %154 = arith.maximumf %151, %153 : vector<32x8xf32>
    %155 = vector.broadcast %152 : f32 to vector<32x8xf32>
    %156 = arith.mulf %155, %154 : vector<32x8xf32>
    %157 = arith.addf %150, %156 : vector<32x8xf32>
    %158 = vector.extract_strided_slice %140 {offsets = [0, 16], sizes = [32, 8], strides = [1, 1]} : vector<32x120xf32> to vector<32x8xf32>
    %c1_71 = arith.constant 1 : index
    %c5_72 = arith.constant 5 : index
    %159 = memref.load %arg1[%c1_71, %c5_72] : memref<9x8xf32, #tpu.memory_space<smem>>
    %160 = math.tanh %158 : vector<32x8xf32>
    %161 = vector.broadcast %159 : f32 to vector<32x8xf32>
    %162 = arith.mulf %161, %160 : vector<32x8xf32>
    %163 = arith.addf %157, %162 : vector<32x8xf32>
    %164 = vector.extract_strided_slice %140 {offsets = [0, 24], sizes = [32, 8], strides = [1, 1]} : vector<32x120xf32> to vector<32x8xf32>
    %c1_73 = arith.constant 1 : index
    %c6_74 = arith.constant 6 : index
    %165 = memref.load %arg1[%c1_73, %c6_74] : memref<9x8xf32, #tpu.memory_space<smem>>
    %166 = arith.negf %164 : vector<32x8xf32>
    %167 = math.exp %166 : vector<32x8xf32>
    %cst_75 = arith.constant 1.000000e+00 : f32
    %168 = vector.broadcast %cst_75 : f32 to vector<32x8xf32>
    %169 = arith.addf %168, %167 : vector<32x8xf32>
    %170 = arith.divf %168, %169 : vector<32x8xf32>
    %171 = vector.broadcast %165 : f32 to vector<32x8xf32>
    %172 = arith.mulf %171, %170 : vector<32x8xf32>
    %173 = arith.addf %163, %172 : vector<32x8xf32>
    %174 = vector.extract_strided_slice %140 {offsets = [0, 32], sizes = [32, 8], strides = [1, 1]} : vector<32x120xf32> to vector<32x8xf32>
    %c1_76 = arith.constant 1 : index
    %c7_77 = arith.constant 7 : index
    %175 = memref.load %arg1[%c1_76, %c7_77] : memref<9x8xf32, #tpu.memory_space<smem>>
    %176 = math.exp %174 : vector<32x8xf32>
    %177 = vector.broadcast %175 : f32 to vector<32x8xf32>
    %178 = arith.mulf %177, %176 : vector<32x8xf32>
    %179 = arith.addf %173, %178 : vector<32x8xf32>
    %180 = arith.addf %51, %179 : vector<32x8xf32>
    %c3_78 = arith.constant 3 : index
    %c1_79 = arith.constant 1 : index
    %181 = memref.load %arg1[%c3_78, %c1_79] : memref<9x8xf32, #tpu.memory_space<smem>>
    %c3_80 = arith.constant 3 : index
    %c2_81 = arith.constant 2 : index
    %182 = memref.load %arg1[%c3_80, %c2_81] : memref<9x8xf32, #tpu.memory_space<smem>>
    %183 = arith.subf %181, %182 : f32
    %184 = vector.broadcast %183 : f32 to vector<32x8xf32>
    %185 = arith.mulf %184, %133 : vector<32x8xf32>
    %186 = vector.extract_strided_slice %140 {offsets = [0, 40], sizes = [32, 8], strides = [1, 1]} : vector<32x120xf32> to vector<32x8xf32>
    %c3_82 = arith.constant 3 : index
    %c3_83 = arith.constant 3 : index
    %187 = memref.load %arg1[%c3_82, %c3_83] : memref<9x8xf32, #tpu.memory_space<smem>>
    %188 = vector.broadcast %187 : f32 to vector<32x8xf32>
    %189 = arith.mulf %188, %186 : vector<32x8xf32>
    %190 = arith.addf %185, %189 : vector<32x8xf32>
    %191 = vector.extract_strided_slice %140 {offsets = [0, 48], sizes = [32, 8], strides = [1, 1]} : vector<32x120xf32> to vector<32x8xf32>
    %c3_84 = arith.constant 3 : index
    %c4_85 = arith.constant 4 : index
    %192 = memref.load %arg1[%c3_84, %c4_85] : memref<9x8xf32, #tpu.memory_space<smem>>
    %cst_86 = arith.constant 0.000000e+00 : f32
    %193 = vector.broadcast %cst_86 : f32 to vector<32x8xf32>
    %194 = arith.maximumf %191, %193 : vector<32x8xf32>
    %195 = vector.broadcast %192 : f32 to vector<32x8xf32>
    %196 = arith.mulf %195, %194 : vector<32x8xf32>
    %197 = arith.addf %190, %196 : vector<32x8xf32>
    %198 = vector.extract_strided_slice %140 {offsets = [0, 56], sizes = [32, 8], strides = [1, 1]} : vector<32x120xf32> to vector<32x8xf32>
    %c3_87 = arith.constant 3 : index
    %c5_88 = arith.constant 5 : index
    %199 = memref.load %arg1[%c3_87, %c5_88] : memref<9x8xf32, #tpu.memory_space<smem>>
    %200 = math.tanh %198 : vector<32x8xf32>
    %201 = vector.broadcast %199 : f32 to vector<32x8xf32>
    %202 = arith.mulf %201, %200 : vector<32x8xf32>
    %203 = arith.addf %197, %202 : vector<32x8xf32>
    %204 = vector.extract_strided_slice %140 {offsets = [0, 64], sizes = [32, 8], strides = [1, 1]} : vector<32x120xf32> to vector<32x8xf32>
    %c3_89 = arith.constant 3 : index
    %c6_90 = arith.constant 6 : index
    %205 = memref.load %arg1[%c3_89, %c6_90] : memref<9x8xf32, #tpu.memory_space<smem>>
    %206 = arith.negf %204 : vector<32x8xf32>
    %207 = math.exp %206 : vector<32x8xf32>
    %cst_91 = arith.constant 1.000000e+00 : f32
    %208 = vector.broadcast %cst_91 : f32 to vector<32x8xf32>
    %209 = arith.addf %208, %207 : vector<32x8xf32>
    %210 = arith.divf %208, %209 : vector<32x8xf32>
    %211 = vector.broadcast %205 : f32 to vector<32x8xf32>
    %212 = arith.mulf %211, %210 : vector<32x8xf32>
    %213 = arith.addf %203, %212 : vector<32x8xf32>
    %214 = vector.extract_strided_slice %140 {offsets = [0, 72], sizes = [32, 8], strides = [1, 1]} : vector<32x120xf32> to vector<32x8xf32>
    %c3_92 = arith.constant 3 : index
    %c7_93 = arith.constant 7 : index
    %215 = memref.load %arg1[%c3_92, %c7_93] : memref<9x8xf32, #tpu.memory_space<smem>>
    %216 = math.exp %214 : vector<32x8xf32>
    %217 = vector.broadcast %215 : f32 to vector<32x8xf32>
    %218 = arith.mulf %217, %216 : vector<32x8xf32>
    %219 = arith.addf %213, %218 : vector<32x8xf32>
    %220 = arith.addf %91, %219 : vector<32x8xf32>
    %c6_94 = arith.constant 6 : index
    %c1_95 = arith.constant 1 : index
    %221 = memref.load %arg1[%c6_94, %c1_95] : memref<9x8xf32, #tpu.memory_space<smem>>
    %c6_96 = arith.constant 6 : index
    %c2_97 = arith.constant 2 : index
    %222 = memref.load %arg1[%c6_96, %c2_97] : memref<9x8xf32, #tpu.memory_space<smem>>
    %223 = arith.subf %221, %222 : f32
    %224 = vector.broadcast %223 : f32 to vector<32x8xf32>
    %225 = arith.mulf %224, %133 : vector<32x8xf32>
    %226 = vector.extract_strided_slice %140 {offsets = [0, 80], sizes = [32, 8], strides = [1, 1]} : vector<32x120xf32> to vector<32x8xf32>
    %c6_98 = arith.constant 6 : index
    %c3_99 = arith.constant 3 : index
    %227 = memref.load %arg1[%c6_98, %c3_99] : memref<9x8xf32, #tpu.memory_space<smem>>
    %228 = vector.broadcast %227 : f32 to vector<32x8xf32>
    %229 = arith.mulf %228, %226 : vector<32x8xf32>
    %230 = arith.addf %225, %229 : vector<32x8xf32>
    %231 = vector.extract_strided_slice %140 {offsets = [0, 88], sizes = [32, 8], strides = [1, 1]} : vector<32x120xf32> to vector<32x8xf32>
    %c6_100 = arith.constant 6 : index
    %c4_101 = arith.constant 4 : index
    %232 = memref.load %arg1[%c6_100, %c4_101] : memref<9x8xf32, #tpu.memory_space<smem>>
    %cst_102 = arith.constant 0.000000e+00 : f32
    %233 = vector.broadcast %cst_102 : f32 to vector<32x8xf32>
    %234 = arith.maximumf %231, %233 : vector<32x8xf32>
    %235 = vector.broadcast %232 : f32 to vector<32x8xf32>
    %236 = arith.mulf %235, %234 : vector<32x8xf32>
    %237 = arith.addf %230, %236 : vector<32x8xf32>
    %238 = vector.extract_strided_slice %140 {offsets = [0, 96], sizes = [32, 8], strides = [1, 1]} : vector<32x120xf32> to vector<32x8xf32>
    %c6_103 = arith.constant 6 : index
    %c5_104 = arith.constant 5 : index
    %239 = memref.load %arg1[%c6_103, %c5_104] : memref<9x8xf32, #tpu.memory_space<smem>>
    %240 = math.tanh %238 : vector<32x8xf32>
    %241 = vector.broadcast %239 : f32 to vector<32x8xf32>
    %242 = arith.mulf %241, %240 : vector<32x8xf32>
    %243 = arith.addf %237, %242 : vector<32x8xf32>
    %244 = vector.extract_strided_slice %140 {offsets = [0, 104], sizes = [32, 8], strides = [1, 1]} : vector<32x120xf32> to vector<32x8xf32>
    %c6_105 = arith.constant 6 : index
    %c6_106 = arith.constant 6 : index
    %245 = memref.load %arg1[%c6_105, %c6_106] : memref<9x8xf32, #tpu.memory_space<smem>>
    %246 = arith.negf %244 : vector<32x8xf32>
    %247 = math.exp %246 : vector<32x8xf32>
    %cst_107 = arith.constant 1.000000e+00 : f32
    %248 = vector.broadcast %cst_107 : f32 to vector<32x8xf32>
    %249 = arith.addf %248, %247 : vector<32x8xf32>
    %250 = arith.divf %248, %249 : vector<32x8xf32>
    %251 = vector.broadcast %245 : f32 to vector<32x8xf32>
    %252 = arith.mulf %251, %250 : vector<32x8xf32>
    %253 = arith.addf %243, %252 : vector<32x8xf32>
    %254 = vector.extract_strided_slice %140 {offsets = [0, 112], sizes = [32, 8], strides = [1, 1]} : vector<32x120xf32> to vector<32x8xf32>
    %c6_108 = arith.constant 6 : index
    %c7_109 = arith.constant 7 : index
    %255 = memref.load %arg1[%c6_108, %c7_109] : memref<9x8xf32, #tpu.memory_space<smem>>
    %256 = math.exp %254 : vector<32x8xf32>
    %257 = vector.broadcast %255 : f32 to vector<32x8xf32>
    %258 = arith.mulf %257, %256 : vector<32x8xf32>
    %259 = arith.addf %253, %258 : vector<32x8xf32>
    %260 = arith.addf %131, %259 : vector<32x8xf32>
    %c0_110 = arith.constant 0 : index
    %c0_111 = arith.constant 0 : index
    %261 = vector.load %arg5[%c0_110, %c0_111] : memref<32x24xf32, #tpu.memory_space<vmem>>, vector<32x8xf32>
    tpu.vector_store %arg5[%c0_110, %c0_111], %180 {strides = array<i32>} : memref<32x24xf32, #tpu.memory_space<vmem>>, vector<32x8xf32>,
    %c2_112 = arith.constant 2 : index
    %c0_113 = arith.constant 0 : index
    %c0_114 = arith.constant 0 : index
    %262 = vector.load %arg3[%c2_112, %c0_113, %c0_114] : memref<4x8x120xf32, #tpu.memory_space<vmem>>, vector<1x8x120xf32>
    %263 = vector.shape_cast %262 : vector<1x8x120xf32> to vector<8x120xf32>
    %cst_115 = arith.constant dense<0.000000e+00> : vector<32x120xf32>
    %264 = tpu.matmul %180, %263, %cst_115 {dimension_numbers = #tpu.dot_dimension_numbers<[1], [0], [0], [1], [0, 0, 1, 1], [], []>} : vector<32x8xf32>, vector<8x120xf32>, vector<32x120xf32> -> vector<32x120xf32>
    %c2_116 = arith.constant 2 : index
    %c0_117 = arith.constant 0 : index
    %c0_118 = arith.constant 0 : index
    %265 = vector.load %arg4[%c2_116, %c0_117, %c0_118] : memref<4x1x120xf32, #tpu.memory_space<vmem>>, vector<1x1x120xf32>
    %266 = vector.shape_cast %265 : vector<1x1x120xf32> to vector<1x120xf32>
    %267 = vector.broadcast %266 : vector<1x120xf32> to vector<32x120xf32>
    %268 = arith.addf %264, %267 : vector<32x120xf32>
    %c4_119 = arith.constant 4 : index
    %c1_120 = arith.constant 1 : index
    %269 = memref.load %arg1[%c4_119, %c1_120] : memref<9x8xf32, #tpu.memory_space<smem>>
    %c4_121 = arith.constant 4 : index
    %c2_122 = arith.constant 2 : index
    %270 = memref.load %arg1[%c4_121, %c2_122] : memref<9x8xf32, #tpu.memory_space<smem>>
    %271 = arith.subf %269, %270 : f32
    %272 = vector.broadcast %271 : f32 to vector<32x8xf32>
    %273 = arith.mulf %272, %180 : vector<32x8xf32>
    %274 = vector.extract_strided_slice %268 {offsets = [0, 0], sizes = [32, 8], strides = [1, 1]} : vector<32x120xf32> to vector<32x8xf32>
    %c4_123 = arith.constant 4 : index
    %c3_124 = arith.constant 3 : index
    %275 = memref.load %arg1[%c4_123, %c3_124] : memref<9x8xf32, #tpu.memory_space<smem>>
    %276 = vector.broadcast %275 : f32 to vector<32x8xf32>
    %277 = arith.mulf %276, %274 : vector<32x8xf32>
    %278 = arith.addf %273, %277 : vector<32x8xf32>
    %279 = vector.extract_strided_slice %268 {offsets = [0, 8], sizes = [32, 8], strides = [1, 1]} : vector<32x120xf32> to vector<32x8xf32>
    %c4_125 = arith.constant 4 : index
    %c4_126 = arith.constant 4 : index
    %280 = memref.load %arg1[%c4_125, %c4_126] : memref<9x8xf32, #tpu.memory_space<smem>>
    %cst_127 = arith.constant 0.000000e+00 : f32
    %281 = vector.broadcast %cst_127 : f32 to vector<32x8xf32>
    %282 = arith.maximumf %279, %281 : vector<32x8xf32>
    %283 = vector.broadcast %280 : f32 to vector<32x8xf32>
    %284 = arith.mulf %283, %282 : vector<32x8xf32>
    %285 = arith.addf %278, %284 : vector<32x8xf32>
    %286 = vector.extract_strided_slice %268 {offsets = [0, 16], sizes = [32, 8], strides = [1, 1]} : vector<32x120xf32> to vector<32x8xf32>
    %c4_128 = arith.constant 4 : index
    %c5_129 = arith.constant 5 : index
    %287 = memref.load %arg1[%c4_128, %c5_129] : memref<9x8xf32, #tpu.memory_space<smem>>
    %288 = math.tanh %286 : vector<32x8xf32>
    %289 = vector.broadcast %287 : f32 to vector<32x8xf32>
    %290 = arith.mulf %289, %288 : vector<32x8xf32>
    %291 = arith.addf %285, %290 : vector<32x8xf32>
    %292 = vector.extract_strided_slice %268 {offsets = [0, 24], sizes = [32, 8], strides = [1, 1]} : vector<32x120xf32> to vector<32x8xf32>
    %c4_130 = arith.constant 4 : index
    %c6_131 = arith.constant 6 : index
    %293 = memref.load %arg1[%c4_130, %c6_131] : memref<9x8xf32, #tpu.memory_space<smem>>
    %294 = arith.negf %292 : vector<32x8xf32>
    %295 = math.exp %294 : vector<32x8xf32>
    %cst_132 = arith.constant 1.000000e+00 : f32
    %296 = vector.broadcast %cst_132 : f32 to vector<32x8xf32>
    %297 = arith.addf %296, %295 : vector<32x8xf32>
    %298 = arith.divf %296, %297 : vector<32x8xf32>
    %299 = vector.broadcast %293 : f32 to vector<32x8xf32>
    %300 = arith.mulf %299, %298 : vector<32x8xf32>
    %301 = arith.addf %291, %300 : vector<32x8xf32>
    %302 = vector.extract_strided_slice %268 {offsets = [0, 32], sizes = [32, 8], strides = [1, 1]} : vector<32x120xf32> to vector<32x8xf32>
    %c4_133 = arith.constant 4 : index
    %c7_134 = arith.constant 7 : index
    %303 = memref.load %arg1[%c4_133, %c7_134] : memref<9x8xf32, #tpu.memory_space<smem>>
    %304 = math.exp %302 : vector<32x8xf32>
    %305 = vector.broadcast %303 : f32 to vector<32x8xf32>
    %306 = arith.mulf %305, %304 : vector<32x8xf32>
    %307 = arith.addf %301, %306 : vector<32x8xf32>
    %308 = arith.addf %220, %307 : vector<32x8xf32>
    %c7_135 = arith.constant 7 : index
    %c1_136 = arith.constant 1 : index
    %309 = memref.load %arg1[%c7_135, %c1_136] : memref<9x8xf32, #tpu.memory_space<smem>>
    %c7_137 = arith.constant 7 : index
    %c2_138 = arith.constant 2 : index
    %310 = memref.load %arg1[%c7_137, %c2_138] : memref<9x8xf32, #tpu.memory_space<smem>>
    %311 = arith.subf %309, %310 : f32
    %312 = vector.broadcast %311 : f32 to vector<32x8xf32>
    %313 = arith.mulf %312, %180 : vector<32x8xf32>
    %314 = vector.extract_strided_slice %268 {offsets = [0, 40], sizes = [32, 8], strides = [1, 1]} : vector<32x120xf32> to vector<32x8xf32>
    %c7_139 = arith.constant 7 : index
    %c3_140 = arith.constant 3 : index
    %315 = memref.load %arg1[%c7_139, %c3_140] : memref<9x8xf32, #tpu.memory_space<smem>>
    %316 = vector.broadcast %315 : f32 to vector<32x8xf32>
    %317 = arith.mulf %316, %314 : vector<32x8xf32>
    %318 = arith.addf %313, %317 : vector<32x8xf32>
    %319 = vector.extract_strided_slice %268 {offsets = [0, 48], sizes = [32, 8], strides = [1, 1]} : vector<32x120xf32> to vector<32x8xf32>
    %c7_141 = arith.constant 7 : index
    %c4_142 = arith.constant 4 : index
    %320 = memref.load %arg1[%c7_141, %c4_142] : memref<9x8xf32, #tpu.memory_space<smem>>
    %cst_143 = arith.constant 0.000000e+00 : f32
    %321 = vector.broadcast %cst_143 : f32 to vector<32x8xf32>
    %322 = arith.maximumf %319, %321 : vector<32x8xf32>
    %323 = vector.broadcast %320 : f32 to vector<32x8xf32>
    %324 = arith.mulf %323, %322 : vector<32x8xf32>
    %325 = arith.addf %318, %324 : vector<32x8xf32>
    %326 = vector.extract_strided_slice %268 {offsets = [0, 56], sizes = [32, 8], strides = [1, 1]} : vector<32x120xf32> to vector<32x8xf32>
    %c7_144 = arith.constant 7 : index
    %c5_145 = arith.constant 5 : index
    %327 = memref.load %arg1[%c7_144, %c5_145] : memref<9x8xf32, #tpu.memory_space<smem>>
    %328 = math.tanh %326 : vector<32x8xf32>
    %329 = vector.broadcast %327 : f32 to vector<32x8xf32>
    %330 = arith.mulf %329, %328 : vector<32x8xf32>
    %331 = arith.addf %325, %330 : vector<32x8xf32>
    %332 = vector.extract_strided_slice %268 {offsets = [0, 64], sizes = [32, 8], strides = [1, 1]} : vector<32x120xf32> to vector<32x8xf32>
    %c7_146 = arith.constant 7 : index
    %c6_147 = arith.constant 6 : index
    %333 = memref.load %arg1[%c7_146, %c6_147] : memref<9x8xf32, #tpu.memory_space<smem>>
    %334 = arith.negf %332 : vector<32x8xf32>
    %335 = math.exp %334 : vector<32x8xf32>
    %cst_148 = arith.constant 1.000000e+00 : f32
    %336 = vector.broadcast %cst_148 : f32 to vector<32x8xf32>
    %337 = arith.addf %336, %335 : vector<32x8xf32>
    %338 = arith.divf %336, %337 : vector<32x8xf32>
    %339 = vector.broadcast %333 : f32 to vector<32x8xf32>
    %340 = arith.mulf %339, %338 : vector<32x8xf32>
    %341 = arith.addf %331, %340 : vector<32x8xf32>
    %342 = vector.extract_strided_slice %268 {offsets = [0, 72], sizes = [32, 8], strides = [1, 1]} : vector<32x120xf32> to vector<32x8xf32>
    %c7_149 = arith.constant 7 : index
    %c7_150 = arith.constant 7 : index
    %343 = memref.load %arg1[%c7_149, %c7_150] : memref<9x8xf32, #tpu.memory_space<smem>>
    %344 = math.exp %342 : vector<32x8xf32>
    %345 = vector.broadcast %343 : f32 to vector<32x8xf32>
    %346 = arith.mulf %345, %344 : vector<32x8xf32>
    %347 = arith.addf %341, %346 : vector<32x8xf32>
    %348 = arith.addf %260, %347 : vector<32x8xf32>
    %c0_151 = arith.constant 0 : index
    %c8 = arith.constant 8 : index
    %349 = vector.load %arg5[%c0_151, %c8] : memref<32x24xf32, #tpu.memory_space<vmem>>, vector<32x8xf32>
    tpu.vector_store %arg5[%c0_151, %c8], %308 {strides = array<i32>} : memref<32x24xf32, #tpu.memory_space<vmem>>, vector<32x8xf32>,
    %c3_152 = arith.constant 3 : index
    %c0_153 = arith.constant 0 : index
    %c0_154 = arith.constant 0 : index
    %350 = vector.load %arg3[%c3_152, %c0_153, %c0_154] : memref<4x8x120xf32, #tpu.memory_space<vmem>>, vector<1x8x120xf32>
    %351 = vector.shape_cast %350 : vector<1x8x120xf32> to vector<8x120xf32>
    %cst_155 = arith.constant dense<0.000000e+00> : vector<32x120xf32>
    %352 = tpu.matmul %308, %351, %cst_155 {dimension_numbers = #tpu.dot_dimension_numbers<[1], [0], [0], [1], [0, 0, 1, 1], [], []>} : vector<32x8xf32>, vector<8x120xf32>, vector<32x120xf32> -> vector<32x120xf32>
    %c3_156 = arith.constant 3 : index
    %c0_157 = arith.constant 0 : index
    %c0_158 = arith.constant 0 : index
    %353 = vector.load %arg4[%c3_156, %c0_157, %c0_158] : memref<4x1x120xf32, #tpu.memory_space<vmem>>, vector<1x1x120xf32>
    %354 = vector.shape_cast %353 : vector<1x1x120xf32> to vector<1x120xf32>
    %355 = vector.broadcast %354 : vector<1x120xf32> to vector<32x120xf32>
    %356 = arith.addf %352, %355 : vector<32x120xf32>
    %c8_159 = arith.constant 8 : index
    %c1_160 = arith.constant 1 : index
    %357 = memref.load %arg1[%c8_159, %c1_160] : memref<9x8xf32, #tpu.memory_space<smem>>
    %c8_161 = arith.constant 8 : index
    %c2_162 = arith.constant 2 : index
    %358 = memref.load %arg1[%c8_161, %c2_162] : memref<9x8xf32, #tpu.memory_space<smem>>
    %359 = arith.subf %357, %358 : f32
    %360 = vector.broadcast %359 : f32 to vector<32x8xf32>
    %361 = arith.mulf %360, %308 : vector<32x8xf32>
    %362 = vector.extract_strided_slice %356 {offsets = [0, 0], sizes = [32, 8], strides = [1, 1]} : vector<32x120xf32> to vector<32x8xf32>
    %c8_163 = arith.constant 8 : index
    %c3_164 = arith.constant 3 : index
    %363 = memref.load %arg1[%c8_163, %c3_164] : memref<9x8xf32, #tpu.memory_space<smem>>
    %364 = vector.broadcast %363 : f32 to vector<32x8xf32>
    %365 = arith.mulf %364, %362 : vector<32x8xf32>
    %366 = arith.addf %361, %365 : vector<32x8xf32>
    %367 = vector.extract_strided_slice %356 {offsets = [0, 8], sizes = [32, 8], strides = [1, 1]} : vector<32x120xf32> to vector<32x8xf32>
    %c8_165 = arith.constant 8 : index
    %c4_166 = arith.constant 4 : index
    %368 = memref.load %arg1[%c8_165, %c4_166] : memref<9x8xf32, #tpu.memory_space<smem>>
    %cst_167 = arith.constant 0.000000e+00 : f32
    %369 = vector.broadcast %cst_167 : f32 to vector<32x8xf32>
    %370 = arith.maximumf %367, %369 : vector<32x8xf32>
    %371 = vector.broadcast %368 : f32 to vector<32x8xf32>
    %372 = arith.mulf %371, %370 : vector<32x8xf32>
    %373 = arith.addf %366, %372 : vector<32x8xf32>
    %374 = vector.extract_strided_slice %356 {offsets = [0, 16], sizes = [32, 8], strides = [1, 1]} : vector<32x120xf32> to vector<32x8xf32>
    %c8_168 = arith.constant 8 : index
    %c5_169 = arith.constant 5 : index
    %375 = memref.load %arg1[%c8_168, %c5_169] : memref<9x8xf32, #tpu.memory_space<smem>>
    %376 = math.tanh %374 : vector<32x8xf32>
    %377 = vector.broadcast %375 : f32 to vector<32x8xf32>
    %378 = arith.mulf %377, %376 : vector<32x8xf32>
    %379 = arith.addf %373, %378 : vector<32x8xf32>
    %380 = vector.extract_strided_slice %356 {offsets = [0, 24], sizes = [32, 8], strides = [1, 1]} : vector<32x120xf32> to vector<32x8xf32>
    %c8_170 = arith.constant 8 : index
    %c6_171 = arith.constant 6 : index
    %381 = memref.load %arg1[%c8_170, %c6_171] : memref<9x8xf32, #tpu.memory_space<smem>>
    %382 = arith.negf %380 : vector<32x8xf32>
    %383 = math.exp %382 : vector<32x8xf32>
    %cst_172 = arith.constant 1.000000e+00 : f32
    %384 = vector.broadcast %cst_172 : f32 to vector<32x8xf32>
    %385 = arith.addf %384, %383 : vector<32x8xf32>
    %386 = arith.divf %384, %385 : vector<32x8xf32>
    %387 = vector.broadcast %381 : f32 to vector<32x8xf32>
    %388 = arith.mulf %387, %386 : vector<32x8xf32>
    %389 = arith.addf %379, %388 : vector<32x8xf32>
    %390 = vector.extract_strided_slice %356 {offsets = [0, 32], sizes = [32, 8], strides = [1, 1]} : vector<32x120xf32> to vector<32x8xf32>
    %c8_173 = arith.constant 8 : index
    %c7_174 = arith.constant 7 : index
    %391 = memref.load %arg1[%c8_173, %c7_174] : memref<9x8xf32, #tpu.memory_space<smem>>
    %392 = math.exp %390 : vector<32x8xf32>
    %393 = vector.broadcast %391 : f32 to vector<32x8xf32>
    %394 = arith.mulf %393, %392 : vector<32x8xf32>
    %395 = arith.addf %389, %394 : vector<32x8xf32>
    %396 = arith.addf %348, %395 : vector<32x8xf32>
    %c0_175 = arith.constant 0 : index
    %c16 = arith.constant 16 : index
    %397 = vector.load %arg5[%c0_175, %c16] : memref<32x24xf32, #tpu.memory_space<vmem>>, vector<32x8xf32>
    tpu.vector_store %arg5[%c0_175, %c16], %396 {strides = array<i32>} : memref<32x24xf32, #tpu.memory_space<vmem>>, vector<32x8xf32>,
    return
  }
  func.func @transform_0(%arg0: i32, %arg1: memref<9x8xf32, #tpu.memory_space<smem>>) -> (i32, i32, i32) {
    %c0_i32 = arith.constant 0 : i32
    %c0_i32_0 = arith.constant 0 : i32
    %c0_i32_1 = arith.constant 0 : i32
    return %c0_i32, %arg0, %c0_i32_0 : i32, i32, i32
  }
  func.func @transform_1(%arg0: i32, %arg1: memref<9x8xf32, #tpu.memory_space<smem>>) -> (i32, i32, i32) {
    %c0_i32 = arith.constant 0 : i32
    %c0_i32_0 = arith.constant 0 : i32
    %c0_i32_1 = arith.constant 0 : i32
    %c0_i32_2 = arith.constant 0 : i32
    return %c0_i32, %c0_i32_0, %c0_i32_1 : i32, i32, i32
  }
  func.func @transform_2(%arg0: i32, %arg1: memref<9x8xf32, #tpu.memory_space<smem>>) -> (i32, i32, i32) {
    %c0_i32 = arith.constant 0 : i32
    %c0_i32_0 = arith.constant 0 : i32
    %c0_i32_1 = arith.constant 0 : i32
    %c0_i32_2 = arith.constant 0 : i32
    return %c0_i32, %c0_i32_0, %c0_i32_1 : i32, i32, i32
  }
  func.func @transform_3(%arg0: i32, %arg1: memref<9x8xf32, #tpu.memory_space<smem>>) -> (i32, i32) {
    %c0_i32 = arith.constant 0 : i32
    %c0_i32_0 = arith.constant 0 : i32
    return %arg0, %c0_i32 : i32, i32
  }
}

</mosaic_0001>

<llo_original>
// kernel: tpu_custom_call.1
$region0: #{tpu_custom_call.1}
  #allocation0 [shape = 'u32[]', space=smem, size = 0x4, offset = 0x4, fixed_abs, tag = 'smem constant byte address 0x4 - core index']
  #allocation1 [shape = 'u32[144,128]{1,0:T(1,128)}', space=vmem, size = 0x12000, scoped, tag = 'internal scratch']
  #allocation2 [shape = 's32[1]{0}', space=sflag, size = 0x4, scoped, tag = 'scoped memory for tpu_custom_call.1']
  #allocation3 [shape = 'u8[8192]{0}', space=smem, size = 0x2000, scoped, tag = 'prefetched SMEM operand 0']
  %s0 = inlined_call_operand.vmem [shape: f32[9,8], index: 0, kind: input, shape index: {}]
  %s1 = inlined_call_operand.vmem [shape: f32[2,64,8], index: 1, kind: input, shape index: {}]
  %s2 = inlined_call_operand.vmem [shape: f32[4,8,120], index: 2, kind: input, shape index: {}]
  %s3 = inlined_call_operand.vmem [shape: f32[4,1,120], index: 3, kind: input, shape index: {}]
  %s4 = inlined_call_operand.vmem [shape: f32[64,24], index: 4, kind: output, shape index: {}]
  %s5 = sld [smem:[#allocation0]]
  $region83: #{tpu_custom_call.1} parent=0
    _
  %s7 = ssub.s32 1, %s5
  %s8 = scalar_select 0, %s7, %s5
  %s9 = sshll.u32 %s0, 4
  %s10 = int_to_ptr.vmem [resolvable:$true] %s9
  %12 = dma.vmem_to_smem %s10, 256, [#allocation3], [#allocation2]
  %13 = dma.done [#allocation2], 256
  %14 = sfence
  $region1: #{tpu_custom_call.1} parent=0
    #allocation4 [shape = 'u8[65536]{0}', space=vmem, size = 0x10000, scoped, tag = 'input window, operand 1']
    loop: start=0, step=1, limit=4
    $region2: #{tpu_custom_call.1} parent=1 // loop_pre_header
      _
    $region3: #{tpu_custom_call.1} parent=1 // loop_header
      %s16 = sphi 0, %s20
      %p17 = scmp.ge.s32.totalorder %s16, 4
      %s26 = sphi 0, %s28
      %s29 = sphi 0, %s26
      %s30 = sphi 0, %s29
      %s46 = sphi 0, %s30
      %s50 = sphi 0, %s50
      %s52 = sphi 0, %s50
      %s53 = sphi 0, %s52
      %s67 = sphi 0, %s53
      %s71 = sphi 0, %s71
      %s73 = sphi 0, %s71
      %s74 = sphi 0, %s73
      %s88 = sphi 0, %s74
      %s94 = sphi 0, %s96
      %s97 = sphi 0, %s94
      %s98 = sphi 0, %s97
      %s114 = sphi 0, %s98
    $region4: #{tpu_custom_call.1} parent=1 // loop_header_branch
      %19 = sbr.rel (%p17) target = $region8
    $region5: #{tpu_custom_call.1} parent=1 // loop_body
      %s21 = ssub.s32 %s16, 1
      %s22 = ssub.s32 %s16, 2
      %s23 = sadd.s32 %s16, 1
      %s24 = ssub.s32 %s16, %s23
      %p25 = scmp.eq.s32.totalorder %s24, 0
      %s27 = sadd.s32 %s26, 1
      %s28 = scalar_select %p25, %s26, %s27
      %p31 = pneg %p25
      %p32 = scmp.eq.s32.totalorder %s16, 1
      %p33 = por %p31, %p32
      %p34 = scmp.ne.s32.totalorder %s26, %s29
      %p35 = scmp.eq.s32.totalorder %s16, 0
      %p36 = por %p34, %p35
      %p37 = scmp.ne.s32.totalorder %s26, %s29
      %p38 = scmp.eq.s32.totalorder %s21, 1
      %p39 = por %p37, %p38
      %p40 = scmp.ne.s32.totalorder %s29, %s30
      %p41 = scmp.eq.s32.totalorder %s21, 0
      %p42 = por %p40, %p41
      %p43 = scmp.ne.s32.totalorder %s29, %s30
      %p44 = scmp.eq.s32.totalorder %s22, 1
      %p45 = por %p43, %p44
      %p47 = scmp.ne.s32.totalorder %s30, %s46
      %p48 = scmp.eq.s32.totalorder %s22, 0
      %p49 = por %p47, %p48
      %s51 = sadd.s32 %s50, 1
      %p54 = scmp.eq.s32.totalorder %s16, 1
      %p55 = scmp.ne.s32.totalorder %s50, %s52
      %p56 = scmp.eq.s32.totalorder %s16, 0
      %p57 = por %p55, %p56
      %p58 = scmp.ne.s32.totalorder %s50, %s52
      %p59 = scmp.eq.s32.totalorder %s21, 1
      %p60 = por %p58, %p59
      %p61 = scmp.ne.s32.totalorder %s52, %s53
      %p62 = scmp.eq.s32.totalorder %s21, 0
      %p63 = por %p61, %p62
      %p64 = scmp.ne.s32.totalorder %s52, %s53
      %p65 = scmp.eq.s32.totalorder %s22, 1
      %p66 = por %p64, %p65
      %p68 = scmp.ne.s32.totalorder %s53, %s67
      %p69 = scmp.eq.s32.totalorder %s22, 0
      %p70 = por %p68, %p69
      %s72 = sadd.s32 %s71, 1
      %p75 = scmp.eq.s32.totalorder %s16, 1
      %p76 = scmp.ne.s32.totalorder %s71, %s73
      %p77 = scmp.eq.s32.totalorder %s16, 0
      %p78 = por %p76, %p77
      %p79 = scmp.ne.s32.totalorder %s71, %s73
      %p80 = scmp.eq.s32.totalorder %s21, 1
      %p81 = por %p79, %p80
      %p82 = scmp.ne.s32.totalorder %s73, %s74
      %p83 = scmp.eq.s32.totalorder %s21, 0
      %p84 = por %p82, %p83
      %p85 = scmp.ne.s32.totalorder %s73, %s74
      %p86 = scmp.eq.s32.totalorder %s22, 1
      %p87 = por %p85, %p86
      %p89 = scmp.ne.s32.totalorder %s74, %s88
      %p90 = scmp.eq.s32.totalorder %s22, 0
      %p91 = por %p89, %p90
      %s92 = ssub.s32 %s16, %s23
      %p93 = scmp.eq.s32.totalorder %s92, 0
      %s95 = sadd.s32 %s94, 1
      %s96 = scalar_select %p93, %s94, %s95
      %p99 = pneg %p93
      %p100 = scmp.eq.s32.totalorder %s16, 1
      %p101 = por %p99, %p100
      %p102 = scmp.ne.s32.totalorder %s94, %s97
      %p103 = scmp.eq.s32.totalorder %s16, 0
      %p104 = por %p102, %p103
      %p105 = scmp.ne.s32.totalorder %s94, %s97
      %p106 = scmp.eq.s32.totalorder %s21, 1
      %p107 = por %p105, %p106
      %p108 = scmp.ne.s32.totalorder %s97, %s98
      %p109 = scmp.eq.s32.totalorder %s21, 0
      %p110 = por %p108, %p109
      %p111 = scmp.ne.s32.totalorder %s97, %s98
      %p112 = scmp.eq.s32.totalorder %s22, 1
      %p113 = por %p111, %p112
      %p115 = scmp.ne.s32.totalorder %s98, %s114
      %p116 = scmp.eq.s32.totalorder %s22, 0
      %p117 = por %p115, %p116
      %p118 = scmp.le.s32.totalorder 1, %s16
      %p119 = scmp.lt.s32.totalorder %s16, 3
      %p120 = pnand %p118, %p119
      %p121 = pneg %p120
      // Predicated region
      $region9: #{tpu_custom_call.1} parent=5 // pred_check
        _
      $region10: #{tpu_custom_call.1} parent=5 // pred_check_branch
        %123 = sbr.rel (%p120) target = $region12
      $region11: #{tpu_custom_call.1} parent=5 // pred_region
        %s124 = ssub.s32 %s16, 1
        // Predicated region
        $region13: #{tpu_custom_call.1} parent=11 // pred_check
          %p125 = pneg %p63
        $region14: #{tpu_custom_call.1} parent=11 // pred_check_branch
          %127 = sbr.rel (%p125) target = $region16
        $region15: #{tpu_custom_call.1} parent=11 // pred_region
          _
        $region16: #{tpu_custom_call.1} parent=11 // pred_fallthru
          _
        // Predicated region
        $region17: #{tpu_custom_call.1} parent=11 // pred_check
          %p128 = pneg %p84
        $region18: #{tpu_custom_call.1} parent=11 // pred_check_branch
          %130 = sbr.rel (%p128) target = $region20
        $region19: #{tpu_custom_call.1} parent=11 // pred_region
          _
        $region20: #{tpu_custom_call.1} parent=11 // pred_fallthru
          _
      $region12: #{tpu_custom_call.1} parent=5 // pred_fallthru
        _
      %p131 = scmp.lt.s32.totalorder %s16, 2
      // Predicated region
      $region21: #{tpu_custom_call.1} parent=5 // pred_check
        %p132 = pneg %p131
      $region22: #{tpu_custom_call.1} parent=5 // pred_check_branch
        %134 = sbr.rel (%p132) target = $region24
      $region23: #{tpu_custom_call.1} parent=5 // pred_region
        // Predicated region
        $region25: #{tpu_custom_call.1} parent=23 // pred_check
          %p135 = pneg %p36
        $region26: #{tpu_custom_call.1} parent=23 // pred_check_branch
          %137 = sbr.rel (%p135) target = $region28
        $region27: #{tpu_custom_call.1} parent=23 // pred_region
          %s138 = sand.u32 %s26, 1
          %s139 = sand.u32 %s26, 1
          %s140 = smul.addr %s139, 64
          %s141 = scalar_lea.vmem [#allocation4], %s140
          %s142 = smul.u32 4, %s16
          %s143 = smul.addr %s142, 8
          %s144 = scalar_lea.vmem %s1, %s143
          // Predicated region
          $region29: #{tpu_custom_call.1} parent=27 // pred_check
            _
          $region30: #{tpu_custom_call.1} parent=27 // pred_check_branch
            %146 = sbr.rel (0) target = $region32
          $region31: #{tpu_custom_call.1} parent=27 // pred_region
            // Predicated region
            $region33: #{tpu_custom_call.1} parent=31 // pred_check
              _
            $region34: #{tpu_custom_call.1} parent=31 // pred_check_branch
              %148 = sbr.rel (0) target = $region36
            $region35: #{tpu_custom_call.1} parent=31 // pred_region
              // Predicated region
              $region48: #{tpu_custom_call.1} parent=35 // pred_check
                _
              $region49: #{tpu_custom_call.1} parent=35 // pred_check_branch
                %177 = sbr.rel (0) target = $region51
              $region50: #{tpu_custom_call.1} parent=35 // pred_region
                loop: start=0, step=1, limit=1
                $region52: #{tpu_custom_call.1} parent=50 // loop_pre_header
                  _
                $region53: #{tpu_custom_call.1} parent=50 // loop_header
                  %s179 = sphi 0, %s183
                  %p180 = scmp.ge.s32.totalorder %s179, 1
                  %s184 = sphi %s144, %s144
                  %s185 = sphi %s141, %s141
                $region54: #{tpu_custom_call.1} parent=50 // loop_header_branch
                  %182 = sbr.rel (%p180) target = $region58
                $region55: #{tpu_custom_call.1} parent=50 // loop_body
                  %v186 = vld [vmem:[%s184] sm:$0xff]
                  %187 = vst [vmem:[%s185] sm:$0xff] %v186
                  %v188 = vld [vmem:[%s184 + $0x8] sm:$0xff]
                  %189 = vst [vmem:[%s185 + $0x8] sm:$0xff] %v188
                  %v190 = vld [vmem:[%s184 + $0x10] sm:$0xff]
                  %191 = vst [vmem:[%s185 + $0x10] sm:$0xff] %v190
                  %v192 = vld [vmem:[%s184 + $0x18] sm:$0xff]
                  %193 = vst [vmem:[%s185 + $0x18] sm:$0xff] %v192
                  %v194 = vld [vmem:[%s184 + $0x40] sm:$0xff]
                  %195 = vst [vmem:[%s185 + $0x20] sm:$0xff] %v194
                  %v196 = vld [vmem:[%s184 + $0x48] sm:$0xff]
                  %197 = vst [vmem:[%s185 + $0x28] sm:$0xff] %v196
                  %v198 = vld [vmem:[%s184 + $0x50] sm:$0xff]
                  %199 = vst [vmem:[%s185 + $0x30] sm:$0xff] %v198
                  %v200 = vld [vmem:[%s184 + $0x58] sm:$0xff]
                  %201 = vst [vmem:[%s185 + $0x38] sm:$0xff] %v200
                $region56: #{tpu_custom_call.1} parent=50 // loop_footer
                  %s183 = sadd.s32 1, %s179
                $region57: #{tpu_custom_call.1} parent=50 // loop_footer_branch
                  %178 = sbr.rel target = $region53
                $region58: #{tpu_custom_call.1} parent=50 // loop_exit
                  _
              $region51: #{tpu_custom_call.1} parent=35 // pred_fallthru
                _
              // Predicated region
              $region59: #{tpu_custom_call.1} parent=35 // pred_check
                _
              $region60: #{tpu_custom_call.1} parent=35 // pred_check_branch
                %203 = sbr.rel target = $region62
              $region61: #{tpu_custom_call.1} parent=35 // pred_region
                _
              $region62: #{tpu_custom_call.1} parent=35 // pred_fallthru
                _
            $region36: #{tpu_custom_call.1} parent=31 // pred_fallthru
              _
            // Predicated region
            $region37: #{tpu_custom_call.1} parent=31 // pred_check
              _
            $region38: #{tpu_custom_call.1} parent=31 // pred_check_branch
              %150 = sbr.rel target = $region40
            $region39: #{tpu_custom_call.1} parent=31 // pred_region
              loop: start=0, step=1, limit=1
              $region41: #{tpu_custom_call.1} parent=39 // loop_pre_header
                _
              $region42: #{tpu_custom_call.1} parent=39 // loop_header
                %s153 = sphi 0, %s157
                %p154 = scmp.ge.s32.totalorder %s153, 1
                %s158 = sphi %s144, %s144
                %s159 = sphi %s141, %s141
              $region43: #{tpu_custom_call.1} parent=39 // loop_header_branch
                %156 = sbr.rel (%p154) target = $region47
              $region44: #{tpu_custom_call.1} parent=39 // loop_body
                %v160 = vld [vmem:[%s158] sm:$0xff]
                %161 = vst [vmem:[%s159] sm:$0xff] %v160
                %v162 = vld [vmem:[%s158 + $0x8] sm:$0xff]
                %163 = vst [vmem:[%s159 + $0x8] sm:$0xff] %v162
                %v164 = vld [vmem:[%s158 + $0x10] sm:$0xff]
                %165 = vst [vmem:[%s159 + $0x10] sm:$0xff] %v164
                %v166 = vld [vmem:[%s158 + $0x18] sm:$0xff]
                %167 = vst [vmem:[%s159 + $0x18] sm:$0xff] %v166
                %v168 = vld [vmem:[%s158 + $0x40] sm:$0xff]
                %169 = vst [vmem:[%s159 + $0x20] sm:$0xff] %v168
                %v170 = vld [vmem:[%s158 + $0x48] sm:$0xff]
                %171 = vst [vmem:[%s159 + $0x28] sm:$0xff] %v170
                %v172 = vld [vmem:[%s158 + $0x50] sm:$0xff]
                %173 = vst [vmem:[%s159 + $0x30] sm:$0xff] %v172
                %v174 = vld [vmem:[%s158 + $0x58] sm:$0xff]
                %175 = vst [vmem:[%s159 + $0x38] sm:$0xff] %v174
              $region45: #{tpu_custom_call.1} parent=39 // loop_footer
                %s157 = sadd.s32 1, %s153
              $region46: #{tpu_custom_call.1} parent=39 // loop_footer_branch
                %152 = sbr.rel target = $region42
              $region47: #{tpu_custom_call.1} parent=39 // loop_exit
                _
            $region40: #{tpu_custom_call.1} parent=31 // pred_fallthru
              _
          $region32: #{tpu_custom_call.1} parent=27 // pred_fallthru
            _
          %204 = vnop
        $region28: #{tpu_custom_call.1} parent=23 // pred_fallthru
          _
      $region24: #{tpu_custom_call.1} parent=5 // pred_fallthru
        _
      %p205 = scmp.le.s32.totalorder 1, %s16
      %p206 = scmp.lt.s32.totalorder %s16, 3
      %p207 = pnand %p205, %p206
      %p208 = pneg %p207
      // Predicated region
      $region63: #{tpu_custom_call.1} parent=5 // pred_check
        _
      $region64: #{tpu_custom_call.1} parent=5 // pred_check_branch
        %210 = sbr.rel (%p207) target = $region66
      $region65: #{tpu_custom_call.1} parent=5 // pred_region
        %s211 = ssub.s32 %s16, 1
        %s212 = sand.u32 %s29, 1
        %s213 = sand.u32 %s29, 1
        %s214 = smul.addr %s213, 64
        %s215 = scalar_lea.vmem [#allocation4], %s214
        // Predicated region
        $region67: #{tpu_custom_call.1} parent=65 // pred_check
          %p216 = pneg %p42
        $region68: #{tpu_custom_call.1} parent=65 // pred_check_branch
          %218 = sbr.rel (%p216) target = $region70
        $region69: #{tpu_custom_call.1} parent=65 // pred_region
          _
        $region70: #{tpu_custom_call.1} parent=65 // pred_fallthru
          _
        %s219 = sand.u32 %s29, 1
        %s220 = sand.u32 %s29, 1
        %s221 = smul.addr %s220, 64
        %s222 = scalar_lea.vmem [#allocation4], %s221
        %p223 = pneg %p42
        %p224 = pneg %p39
        %p225 = pneg %p63
        %p226 = pneg %p60
        %p227 = pneg %p84
        %p228 = pneg %p81
        %p229 = pneg %p110
        %p230 = pneg %p107
        %s231 = smul.u32 4, %s21
        %p232 = scmp.lt.s32.totalorder %s231, 7
        %s233 = scalar_select %p232, %s231, 7
        %s234 = smul.addr %s233, 8
        %s235 = scalar_lea.vmem %s4, %s234
        %s236 = smul.u32 4, %s21
        %s237 = smul.u32 4, %s21
        %p238 = scmp.lt.s32.totalorder %s237, 7
        %s239 = scalar_select %p238, %s237, 7
        %s240 = smul.addr %s239, 8
        %s241 = scalar_lea.vmem %s4, %s240
        %s242 = smul.u32 4, %s21
        %v243 = vld [vmem:[%s215] sm:$0xff]
        %v244 = vld [vmem:[%s215 + $0x8] sm:$0xff]
        %v245 = vld [vmem:[%s215 + $0x10] sm:$0xff]
        %v246 = vld [vmem:[%s215 + $0x18] sm:$0xff]
        %v247 = vld [vmem:[%s2] sm:$0xff]
        %v248 = vld [vmem:[%s3] sm:$0x1]
        %v250 = vlaneseq
        %v251 = vshrl.u32 %v250, 7
        %v252 = vsub.s32 0, %v251
        %v253 = vrot.slane %v248, %v252
        %vm255 = vcmask 64512
        %v257 = vsel %vm255, %v243, 0
        %v260 = vsel %vm255, %v244, 0
        %v263 = vsel %vm255, %v245, 0
        %v266 = vsel %vm255, %v246, 0
        %268 = vmatprep.subr.mxu0 0.0
        %269 = vmatpush1.msra.mxu0 %v247
        %270 = vmatprep.subr.mxu0 0.0
        %271 = vmatpush1.msra.mxu0 0.0
        %272 = vmatprep.subr.mxu0 0.0
        %273 = vmatpush1.msra.mxu0 0.0
        %274 = vmatprep.subr.mxu0 0.0
        %275 = vmatpush1.msra.mxu0 0.0
        %276 = vmatprep.subr.mxu0 0.0
        %277 = vmatpush1.msra.mxu0 0.0
        %278 = vmatprep.subr.mxu0 0.0
        %279 = vmatpush1.msra.mxu0 0.0
        %280 = vmatprep.subr.mxu0 0.0
        %281 = vmatpush1.msra.mxu0 0.0
        %282 = vmatprep.subr.mxu0 0.0
        %283 = vmatpush1.msra.mxu0 0.0
        %284 = vmatprep.subr.mxu0 0.0
        %285 = vmatpush1.msra.mxu0 0.0
        %286 = vmatprep.subr.mxu0 0.0
        %287 = vmatpush1.msra.mxu0 0.0
        %288 = vmatprep.subr.mxu0 0.0
        %289 = vmatpush1.msra.mxu0 0.0
        %290 = vmatprep.subr.mxu0 0.0
        %291 = vmatpush1.msra.mxu0 0.0
        %292 = vmatprep.subr.mxu0 0.0
        %293 = vmatpush1.msra.mxu0 0.0
        %294 = vmatprep.subr.mxu0 0.0
        %295 = vmatpush1.msra.mxu0 0.0
        %296 = vmatprep.subr.mxu0 0.0
        %297 = vmatpush1.msra.mxu0 0.0
        %298 = vmatprep.subr.mxu0 0.0
        %299 = vmatpush1.msra.mxu0 0.0
        %300 = vmatprep.subr.mxu0 0.0
        %301 = vmatpush1.msra.mxu0 0.0
        %302 = vmatprep.subr.mxu0 0.0
        %303 = vmatpush1.msra.mxu0 0.0
        %304 = vmatprep.subr.mxu0 0.0
        %305 = vmatpush1.msra.mxu0 0.0
        %306 = vmatprep.subr.mxu0 0.0
        %307 = vmatpush1.msra.mxu0 0.0
        %308 = vmatprep.subr.mxu0 0.0
        %309 = vmatpush1.msra.mxu0 0.0
        %310 = vmatprep.subr.mxu0 0.0
        %311 = vmatpush1.msra.mxu0 0.0
        %312 = vmatprep.subr.mxu0 0.0
        %313 = vmatpush1.msra.mxu0 0.0
        %314 = vmatprep.subr.mxu0 0.0
        %315 = vmatpush1.msra.mxu0 0.0
        %316 = vmatprep.subr.mxu0 0.0
        %317 = vmatpush1.msra.mxu0 0.0
        %318 = vmatprep.subr.mxu0 0.0
        %319 = vmatpush1.msra.mxu0 0.0
        %320 = vmatprep.subr.mxu0 0.0
        %321 = vmatpush1.msra.mxu0 0.0
        %322 = vmatprep.subr.mxu0 0.0
        %323 = vmatpush1.msra.mxu0 0.0
        %324 = vmatprep.subr.mxu0 0.0
        %325 = vmatpush1.msra.mxu0 0.0
        %326 = vmatprep.subr.mxu0 0.0
        %327 = vmatpush1.msra.mxu0 0.0
        %328 = vmatprep.subr.mxu0 0.0
        %329 = vmatpush1.msra.mxu0 0.0
        %330 = vmatprep.subr.mxu0 0.0
        %331 = vmatpush1.msra.mxu0 0.0
        %332 = vmatprep.mubr.f32.mxu0 0.0
        %333 = vmatmul.mubr.f32.gmra.mrb[0].mxu0 %v257
        %v334 = vpop.f32.mrb[0].mxu0
        %v335 = vadd.f32 %v253, %v334
        %v336 = vpop.f32.mrb[0].mxu0
        %337 = vmatprep.mubr.f32.mxu0 0.0
        %338 = vmatmul.mubr.f32.gmra.mrb[0].mxu0 %v260
        %v339 = vpop.f32.mrb[0].mxu0
        %v340 = vadd.f32 %v253, %v339
        %v341 = vpop.f32.mrb[0].mxu0
        %342 = vmatprep.mubr.f32.mxu0 0.0
        %343 = vmatmul.mubr.f32.gmra.mrb[0].mxu0 %v263
        %v344 = vpop.f32.mrb[0].mxu0
        %v345 = vadd.f32 %v253, %v344
        %v346 = vpop.f32.mrb[0].mxu0
        %347 = vmatprep.mubr.f32.mxu0 0.0
        %348 = vmatmul.mubr.f32.gmra.mrb[0].mxu0 %v266
        %v349 = vpop.f32.mrb[0].mxu0
        %v350 = vadd.f32 %v253, %v349
        %v351 = vpop.f32.mrb[0].mxu0
        %352 = vdwg.mxu0
        %s353 = sld [smem:[#allocation3 + $0x1]]
        %s354 = sld [smem:[#allocation3 + $0x2]]
        %s355 = ssub.f32 %s353, %s354
        %v356 = vstv %s355
        %v357 = vmul.f32 %v356, %v243
        %v358 = vmul.f32 %v356, %v244
        %v359 = vmul.f32 %v356, %v245
        %v360 = vmul.f32 %v356, %v246
        %s361 = sld [smem:[#allocation3 + $0x3]]
        %v362 = vstv %s361
        %v363 = vmul.f32 %v362, %v335
        %v364 = vmul.f32 %v362, %v340
        %v365 = vmul.f32 %v362, %v345
        %v366 = vmul.f32 %v362, %v350
        %v367 = vadd.f32 %v357, %v363
        %v368 = vadd.f32 %v358, %v364
        %v369 = vadd.f32 %v359, %v365
        %v370 = vadd.f32 %v360, %v366
        %s371 = sld [smem:[#allocation3 + $0x4]]
        %v372 = vmax.f32 %v335, 0.0
        %v373 = vmax.f32 %v340, 0.0
        %v374 = vmax.f32 %v345, 0.0
        %v375 = vmax.f32 %v350, 0.0
        %v376 = vstv %s371
        %v377 = vmul.f32 %v376, %v372
        %v378 = vmul.f32 %v376, %v373
        %v379 = vmul.f32 %v376, %v374
        %v380 = vmul.f32 %v376, %v375
        %385 = vrot.lane.b32.xlu0 %v377, 120
        %v386 = vpop.permute.xlu0 %385
        %387 = vrot.lane.b32.xlu0 %v378, 120
        %v388 = vpop.permute.xlu0 %387
        %389 = vrot.lane.b32.xlu0 %v379, 120
        %v390 = vpop.permute.xlu0 %389
        %391 = vrot.lane.b32.xlu0 %v380, 120
        %v392 = vpop.permute.xlu0 %391
        %v397 = vadd.f32 %v367, %v386
        %v398 = vadd.f32 %v368, %v388
        %v399 = vadd.f32 %v369, %v390
        %v400 = vadd.f32 %v370, %v392
        %s401 = sld [smem:[#allocation3 + $0x5]]
        %v402 = vtanh.pop %v335
        %v403 = vtanh.pop %v340
        %v404 = vtanh.pop %v345
        %v405 = vtanh.pop %v350
        %v406 = vstv %s401
        %v407 = vmul.f32 %v406, %v402
        %v408 = vmul.f32 %v406, %v403
        %v409 = vmul.f32 %v406, %v404
        %v410 = vmul.f32 %v406, %v405
        %415 = vrot.lane.b32.xlu0 %v407, 112
        %v416 = vpop.permute.xlu0 %415
        %417 = vrot.lane.b32.xlu0 %v408, 112
        %v418 = vpop.permute.xlu0 %417
        %419 = vrot.lane.b32.xlu0 %v409, 112
        %v420 = vpop.permute.xlu0 %419
        %421 = vrot.lane.b32.xlu0 %v410, 112
        %v422 = vpop.permute.xlu0 %421
        %v427 = vadd.f32 %v397, %v416
        %v428 = vadd.f32 %v398, %v418
        %v429 = vadd.f32 %v399, %v420
        %v430 = vadd.f32 %v400, %v422
        %s431 = sld [smem:[#allocation3 + $0x6]]
        %v432 = vxor.u32 %v335, 2147483648
        %v433 = vxor.u32 %v340, 2147483648
        %v434 = vxor.u32 %v345, 2147483648
        %v435 = vxor.u32 %v350, 2147483648
        %v436 = vmul.f32 %v432, 1.442695
        %v437 = vpow.pop %v436
        %v438 = vmul.f32 %v433, 1.442695
        %v439 = vpow.pop %v438
        %v440 = vmul.f32 %v434, 1.442695
        %v441 = vpow.pop %v440
        %v442 = vmul.f32 %v435, 1.442695
        %v443 = vpow.pop %v442
        %v444 = vadd.f32 %v437, 1.0
        %v445 = vadd.f32 %v439, 1.0
        %v446 = vadd.f32 %v441, 1.0
        %v447 = vadd.f32 %v443, 1.0
        %v448 = vrcp.pop %v444
        %v449 = vmul.f32 1.0, %v448
        %v450 = vrcp.pop %v445
        %v451 = vmul.f32 1.0, %v450
        %v452 = vrcp.pop %v446
        %v453 = vmul.f32 1.0, %v452
        %v454 = vrcp.pop %v447
        %v455 = vmul.f32 1.0, %v454
        %v456 = vstv %s431
        %v457 = vmul.f32 %v456, %v449
        %v458 = vmul.f32 %v456, %v451
        %v459 = vmul.f32 %v456, %v453
        %v460 = vmul.f32 %v456, %v455
        %465 = vrot.lane.b32.xlu0 %v457, 104
        %v466 = vpop.permute.xlu0 %465
        %467 = vrot.lane.b32.xlu0 %v458, 104
        %v468 = vpop.permute.xlu0 %467
        %469 = vrot.lane.b32.xlu0 %v459, 104
        %v470 = vpop.permute.xlu0 %469
        %471 = vrot.lane.b32.xlu0 %v460, 104
        %v472 = vpop.permute.xlu0 %471
        %v477 = vadd.f32 %v427, %v466
        %v478 = vadd.f32 %v428, %v468
        %v479 = vadd.f32 %v429, %v470
        %v480 = vadd.f32 %v430, %v472
        %s481 = sld [smem:[#allocation3 + $0x7]]
        %v482 = vmul.f32 %v335, 1.442695
        %v483 = vpow.pop %v482
        %v484 = vmul.f32 %v340, 1.442695
        %v485 = vpow.pop %v484
        %v486 = vmul.f32 %v345, 1.442695
        %v487 = vpow.pop %v486
        %v488 = vmul.f32 %v350, 1.442695
        %v489 = vpow.pop %v488
        %v490 = vstv %s481
        %v491 = vmul.f32 %v490, %v483
        %v492 = vmul.f32 %v490, %v485
        %v493 = vmul.f32 %v490, %v487
        %v494 = vmul.f32 %v490, %v489
        %499 = vrot.lane.b32.xlu0 %v491, 96
        %v500 = vpop.permute.xlu0 %499
        %501 = vrot.lane.b32.xlu0 %v492, 96
        %v502 = vpop.permute.xlu0 %501
        %503 = vrot.lane.b32.xlu0 %v493, 96
        %v504 = vpop.permute.xlu0 %503
        %505 = vrot.lane.b32.xlu0 %v494, 96
        %v506 = vpop.permute.xlu0 %505
        %v511 = vadd.f32 %v477, %v500
        %v512 = vadd.f32 %v478, %v502
        %v513 = vadd.f32 %v479, %v504
        %v514 = vadd.f32 %v480, %v506
        %v515 = vadd.f32 %v511, 0.0
        %v516 = vadd.f32 %v512, 0.0
        %v517 = vadd.f32 %v513, 0.0
        %v518 = vadd.f32 %v514, 0.0
        %s519 = sld [smem:[#allocation3 + $0x101]]
        %s520 = sld [smem:[#allocation3 + $0x102]]
        %s521 = ssub.f32 %s519, %s520
        %v522 = vstv %s521
        %v523 = vmul.f32 %v522, %v243
        %v524 = vmul.f32 %v522, %v244
        %v525 = vmul.f32 %v522, %v245
        %v526 = vmul.f32 %v522, %v246
        %s527 = sld [smem:[#allocation3 + $0x103]]
        %v528 = vstv %s527
        %v529 = vmul.f32 %v528, %v335
        %v530 = vmul.f32 %v528, %v340
        %v531 = vmul.f32 %v528, %v345
        %v532 = vmul.f32 %v528, %v350
        %537 = vrot.lane.b32.xlu0 %v529, 88
        %v538 = vpop.permute.xlu0 %537
        %539 = vrot.lane.b32.xlu0 %v530, 88
        %v540 = vpop.permute.xlu0 %539
        %541 = vrot.lane.b32.xlu0 %v531, 88
        %v542 = vpop.permute.xlu0 %541
        %543 = vrot.lane.b32.xlu0 %v532, 88
        %v544 = vpop.permute.xlu0 %543
        %v549 = vadd.f32 %v523, %v538
        %v550 = vadd.f32 %v524, %v540
        %v551 = vadd.f32 %v525, %v542
        %v552 = vadd.f32 %v526, %v544
        %s553 = sld [smem:[#allocation3 + $0x104]]
        %v554 = vstv %s553
        %v555 = vmul.f32 %v554, %v372
        %v556 = vmul.f32 %v554, %v373
        %v557 = vmul.f32 %v554, %v374
        %v558 = vmul.f32 %v554, %v375
        %563 = vrot.lane.b32.xlu0 %v555, 80
        %v564 = vpop.permute.xlu0 %563
        %565 = vrot.lane.b32.xlu0 %v556, 80
        %v566 = vpop.permute.xlu0 %565
        %567 = vrot.lane.b32.xlu0 %v557, 80
        %v568 = vpop.permute.xlu0 %567
        %569 = vrot.lane.b32.xlu0 %v558, 80
        %v570 = vpop.permute.xlu0 %569
        %v575 = vadd.f32 %v549, %v564
        %v576 = vadd.f32 %v550, %v566
        %v577 = vadd.f32 %v551, %v568
        %v578 = vadd.f32 %v552, %v570
        %s579 = sld [smem:[#allocation3 + $0x105]]
        %v580 = vstv %s579
        %v581 = vmul.f32 %v580, %v402
        %v582 = vmul.f32 %v580, %v403
        %v583 = vmul.f32 %v580, %v404
        %v584 = vmul.f32 %v580, %v405
        %589 = vrot.lane.b32.xlu0 %v581, 72
        %v590 = vpop.permute.xlu0 %589
        %591 = vrot.lane.b32.xlu0 %v582, 72
        %v592 = vpop.permute.xlu0 %591
        %593 = vrot.lane.b32.xlu0 %v583, 72
        %v594 = vpop.permute.xlu0 %593
        %595 = vrot.lane.b32.xlu0 %v584, 72
        %v596 = vpop.permute.xlu0 %595
        %v601 = vadd.f32 %v575, %v590
        %v602 = vadd.f32 %v576, %v592
        %v603 = vadd.f32 %v577, %v594
        %v604 = vadd.f32 %v578, %v596
        %s605 = sld [smem:[#allocation3 + $0x106]]
        %v606 = vstv %s605
        %v607 = vmul.f32 %v606, %v449
        %v608 = vmul.f32 %v606, %v451
        %v609 = vmul.f32 %v606, %v453
        %v610 = vmul.f32 %v606, %v455
        %615 = vrot.lane.b32.xlu0 %v607, 64
        %v616 = vpop.permute.xlu0 %615
        %617 = vrot.lane.b32.xlu0 %v608, 64
        %v618 = vpop.permute.xlu0 %617
        %619 = vrot.lane.b32.xlu0 %v609, 64
        %v620 = vpop.permute.xlu0 %619
        %621 = vrot.lane.b32.xlu0 %v610, 64
        %v622 = vpop.permute.xlu0 %621
        %v627 = vadd.f32 %v601, %v616
        %v628 = vadd.f32 %v602, %v618
        %v629 = vadd.f32 %v603, %v620
        %v630 = vadd.f32 %v604, %v622
        %s631 = sld [smem:[#allocation3 + $0x107]]
        %v632 = vstv %s631
        %v633 = vmul.f32 %v632, %v483
        %v634 = vmul.f32 %v632, %v485
        %v635 = vmul.f32 %v632, %v487
        %v636 = vmul.f32 %v632, %v489
        %641 = vrot.lane.b32.xlu0 %v633, 56
        %v642 = vpop.permute.xlu0 %641
        %643 = vrot.lane.b32.xlu0 %v634, 56
        %v644 = vpop.permute.xlu0 %643
        %645 = vrot.lane.b32.xlu0 %v635, 56
        %v646 = vpop.permute.xlu0 %645
        %647 = vrot.lane.b32.xlu0 %v636, 56
        %v648 = vpop.permute.xlu0 %647
        %v653 = vadd.f32 %v627, %v642
        %v654 = vadd.f32 %v628, %v644
        %v655 = vadd.f32 %v629, %v646
        %v656 = vadd.f32 %v630, %v648
        %v657 = vadd.f32 %v653, 0.0
        %v658 = vadd.f32 %v654, 0.0
        %v659 = vadd.f32 %v655, 0.0
        %v660 = vadd.f32 %v656, 0.0
        %s661 = sld [smem:[#allocation3 + $0x281]]
        %s662 = sld [smem:[#allocation3 + $0x282]]
        %s663 = ssub.f32 %s661, %s662
        %v664 = vstv %s663
        %v665 = vmul.f32 %v664, %v243
        %v666 = vmul.f32 %v664, %v244
        %v667 = vmul.f32 %v664, %v245
        %v668 = vmul.f32 %v664, %v246
        %s669 = sld [smem:[#allocation3 + $0x283]]
        %v670 = vstv %s669
        %v671 = vmul.f32 %v670, %v335
        %v672 = vmul.f32 %v670, %v340
        %v673 = vmul.f32 %v670, %v345
        %v674 = vmul.f32 %v670, %v350
        %679 = vrot.lane.b32.xlu0 %v671, 48
        %v680 = vpop.permute.xlu0 %679
        %681 = vrot.lane.b32.xlu0 %v672, 48
        %v682 = vpop.permute.xlu0 %681
        %683 = vrot.lane.b32.xlu0 %v673, 48
        %v684 = vpop.permute.xlu0 %683
        %685 = vrot.lane.b32.xlu0 %v674, 48
        %v686 = vpop.permute.xlu0 %685
        %v691 = vadd.f32 %v665, %v680
        %v692 = vadd.f32 %v666, %v682
        %v693 = vadd.f32 %v667, %v684
        %v694 = vadd.f32 %v668, %v686
        %s695 = sld [smem:[#allocation3 + $0x284]]
        %v696 = vstv %s695
        %v697 = vmul.f32 %v696, %v372
        %v698 = vmul.f32 %v696, %v373
        %v699 = vmul.f32 %v696, %v374
        %v700 = vmul.f32 %v696, %v375
        %705 = vrot.lane.b32.xlu0 %v697, 40
        %v706 = vpop.permute.xlu0 %705
        %707 = vrot.lane.b32.xlu0 %v698, 40
        %v708 = vpop.permute.xlu0 %707
        %709 = vrot.lane.b32.xlu0 %v699, 40
        %v710 = vpop.permute.xlu0 %709
        %711 = vrot.lane.b32.xlu0 %v700, 40
        %v712 = vpop.permute.xlu0 %711
        %v717 = vadd.f32 %v691, %v706
        %v718 = vadd.f32 %v692, %v708
        %v719 = vadd.f32 %v693, %v710
        %v720 = vadd.f32 %v694, %v712
        %s721 = sld [smem:[#allocation3 + $0x285]]
        %v722 = vstv %s721
        %v723 = vmul.f32 %v722, %v402
        %v724 = vmul.f32 %v722, %v403
        %v725 = vmul.f32 %v722, %v404
        %v726 = vmul.f32 %v722, %v405
        %731 = vrot.lane.b32.xlu0 %v723, 32
        %v732 = vpop.permute.xlu0 %731
        %733 = vrot.lane.b32.xlu0 %v724, 32
        %v734 = vpop.permute.xlu0 %733
        %735 = vrot.lane.b32.xlu0 %v725, 32
        %v736 = vpop.permute.xlu0 %735
        %737 = vrot.lane.b32.xlu0 %v726, 32
        %v738 = vpop.permute.xlu0 %737
        %v743 = vadd.f32 %v717, %v732
        %v744 = vadd.f32 %v718, %v734
        %v745 = vadd.f32 %v719, %v736
        %v746 = vadd.f32 %v720, %v738
        %s747 = sld [smem:[#allocation3 + $0x286]]
        %v748 = vstv %s747
        %v749 = vmul.f32 %v748, %v449
        %v750 = vmul.f32 %v748, %v451
        %v751 = vmul.f32 %v748, %v453
        %v752 = vmul.f32 %v748, %v455
        %757 = vrot.lane.b32.xlu0 %v749, 24
        %v758 = vpop.permute.xlu0 %757
        %759 = vrot.lane.b32.xlu0 %v750, 24
        %v760 = vpop.permute.xlu0 %759
        %761 = vrot.lane.b32.xlu0 %v751, 24
        %v762 = vpop.permute.xlu0 %761
        %763 = vrot.lane.b32.xlu0 %v752, 24
        %v764 = vpop.permute.xlu0 %763
        %v769 = vadd.f32 %v743, %v758
        %v770 = vadd.f32 %v744, %v760
        %v771 = vadd.f32 %v745, %v762
        %v772 = vadd.f32 %v746, %v764
        %s773 = sld [smem:[#allocation3 + $0x287]]
        %v774 = vstv %s773
        %v775 = vmul.f32 %v774, %v483
        %v776 = vmul.f32 %v774, %v485
        %v777 = vmul.f32 %v774, %v487
        %v778 = vmul.f32 %v774, %v489
        %783 = vrot.lane.b32.xlu0 %v775, 16
        %v784 = vpop.permute.xlu0 %783
        %785 = vrot.lane.b32.xlu0 %v776, 16
        %v786 = vpop.permute.xlu0 %785
        %787 = vrot.lane.b32.xlu0 %v777, 16
        %v788 = vpop.permute.xlu0 %787
        %789 = vrot.lane.b32.xlu0 %v778, 16
        %v790 = vpop.permute.xlu0 %789
        %v795 = vadd.f32 %v769, %v784
        %v796 = vadd.f32 %v770, %v786
        %v797 = vadd.f32 %v771, %v788
        %v798 = vadd.f32 %v772, %v790
        %v799 = vadd.f32 %v795, 0.0
        %v800 = vadd.f32 %v796, 0.0
        %v801 = vadd.f32 %v797, 0.0
        %v802 = vadd.f32 %v798, 0.0
        %s803 = scalar_lea.vmem %s215, 32 [#allocation4]
        %v804 = vld [vmem:[%s803] sm:$0xff]
        %v805 = vld [vmem:[%s803 + $0x8] sm:$0xff]
        %v806 = vld [vmem:[%s803 + $0x10] sm:$0xff]
        %v807 = vld [vmem:[%s803 + $0x18] sm:$0xff]
        %s808 = scalar_lea.vmem %s2, 8
        %v809 = vld [vmem:[%s808] sm:$0xff]
        %s810 = scalar_lea.vmem %s3, 1
        %v811 = vld [vmem:[%s810] sm:$0x1]
        %v813 = vlaneseq
        %v814 = vshrl.u32 %v813, 7
        %v815 = vsub.s32 0, %v814
        %v816 = vrot.slane %v811, %v815
        %v819 = vsel %vm255, %v804, 0
        %v822 = vsel %vm255, %v805, 0
        %v825 = vsel %vm255, %v806, 0
        %v828 = vsel %vm255, %v807, 0
        %830 = vmatprep.subr.mxu0 0.0
        %831 = vmatpush1.msra.mxu0 %v809
        %832 = vmatprep.subr.mxu0 0.0
        %833 = vmatpush1.msra.mxu0 0.0
        %834 = vmatprep.subr.mxu0 0.0
        %835 = vmatpush1.msra.mxu0 0.0
        %836 = vmatprep.subr.mxu0 0.0
        %837 = vmatpush1.msra.mxu0 0.0
        %838 = vmatprep.subr.mxu0 0.0
        %839 = vmatpush1.msra.mxu0 0.0
        %840 = vmatprep.subr.mxu0 0.0
        %841 = vmatpush1.msra.mxu0 0.0
        %842 = vmatprep.subr.mxu0 0.0
        %843 = vmatpush1.msra.mxu0 0.0
        %844 = vmatprep.subr.mxu0 0.0
        %845 = vmatpush1.msra.mxu0 0.0
        %846 = vmatprep.subr.mxu0 0.0
        %847 = vmatpush1.msra.mxu0 0.0
        %848 = vmatprep.subr.mxu0 0.0
        %849 = vmatpush1.msra.mxu0 0.0
        %850 = vmatprep.subr.mxu0 0.0
        %851 = vmatpush1.msra.mxu0 0.0
        %852 = vmatprep.subr.mxu0 0.0
        %853 = vmatpush1.msra.mxu0 0.0
        %854 = vmatprep.subr.mxu0 0.0
        %855 = vmatpush1.msra.mxu0 0.0
        %856 = vmatprep.subr.mxu0 0.0
        %857 = vmatpush1.msra.mxu0 0.0
        %858 = vmatprep.subr.mxu0 0.0
        %859 = vmatpush1.msra.mxu0 0.0
        %860 = vmatprep.subr.mxu0 0.0
        %861 = vmatpush1.msra.mxu0 0.0
        %862 = vmatprep.subr.mxu0 0.0
        %863 = vmatpush1.msra.mxu0 0.0
        %864 = vmatprep.subr.mxu0 0.0
        %865 = vmatpush1.msra.mxu0 0.0
        %866 = vmatprep.subr.mxu0 0.0
        %867 = vmatpush1.msra.mxu0 0.0
        %868 = vmatprep.subr.mxu0 0.0
        %869 = vmatpush1.msra.mxu0 0.0
        %870 = vmatprep.subr.mxu0 0.0
        %871 = vmatpush1.msra.mxu0 0.0
        %872 = vmatprep.subr.mxu0 0.0
        %873 = vmatpush1.msra.mxu0 0.0
        %874 = vmatprep.subr.mxu0 0.0
        %875 = vmatpush1.msra.mxu0 0.0
        %876 = vmatprep.subr.mxu0 0.0
        %877 = vmatpush1.msra.mxu0 0.0
        %878 = vmatprep.subr.mxu0 0.0
        %879 = vmatpush1.msra.mxu0 0.0
        %880 = vmatprep.subr.mxu0 0.0
        %881 = vmatpush1.msra.mxu0 0.0
        %882 = vmatprep.subr.mxu0 0.0
        %883 = vmatpush1.msra.mxu0 0.0
        %884 = vmatprep.subr.mxu0 0.0
        %885 = vmatpush1.msra.mxu0 0.0
        %886 = vmatprep.subr.mxu0 0.0
        %887 = vmatpush1.msra.mxu0 0.0
        %888 = vmatprep.subr.mxu0 0.0
        %889 = vmatpush1.msra.mxu0 0.0
        %890 = vmatprep.subr.mxu0 0.0
        %891 = vmatpush1.msra.mxu0 0.0
        %892 = vmatprep.subr.mxu0 0.0
        %893 = vmatpush1.msra.mxu0 0.0
        %894 = vmatprep.mubr.f32.mxu0 0.0
        %895 = vmatmul.mubr.f32.gmra.mrb[0].mxu0 %v819
        %v896 = vpop.f32.mrb[0].mxu0
        %v897 = vadd.f32 %v816, %v896
        %v898 = vpop.f32.mrb[0].mxu0
        %899 = vmatprep.mubr.f32.mxu0 0.0
        %900 = vmatmul.mubr.f32.gmra.mrb[0].mxu0 %v822
        %v901 = vpop.f32.mrb[0].mxu0
        %v902 = vadd.f32 %v816, %v901
        %v903 = vpop.f32.mrb[0].mxu0
        %904 = vmatprep.mubr.f32.mxu0 0.0
        %905 = vmatmul.mubr.f32.gmra.mrb[0].mxu0 %v825
        %v906 = vpop.f32.mrb[0].mxu0
        %v907 = vadd.f32 %v816, %v906
        %v908 = vpop.f32.mrb[0].mxu0
        %909 = vmatprep.mubr.f32.mxu0 0.0
        %910 = vmatmul.mubr.f32.gmra.mrb[0].mxu0 %v828
        %v911 = vpop.f32.mrb[0].mxu0
        %v912 = vadd.f32 %v816, %v911
        %v913 = vpop.f32.mrb[0].mxu0
        %914 = vdwg.mxu0
        %s915 = sld [smem:[#allocation3 + $0x81]]
        %s916 = sld [smem:[#allocation3 + $0x82]]
        %s917 = ssub.f32 %s915, %s916
        %v918 = vstv %s917
        %v919 = vmul.f32 %v918, %v804
        %v920 = vmul.f32 %v918, %v805
        %v921 = vmul.f32 %v918, %v806
        %v922 = vmul.f32 %v918, %v807
        %s923 = sld [smem:[#allocation3 + $0x83]]
        %v924 = vstv %s923
        %v925 = vmul.f32 %v924, %v897
        %v926 = vmul.f32 %v924, %v902
        %v927 = vmul.f32 %v924, %v907
        %v928 = vmul.f32 %v924, %v912
        %v929 = vadd.f32 %v919, %v925
        %v930 = vadd.f32 %v920, %v926
        %v931 = vadd.f32 %v921, %v927
        %v932 = vadd.f32 %v922, %v928
        %s933 = sld [smem:[#allocation3 + $0x84]]
        %v934 = vmax.f32 %v897, 0.0
        %v935 = vmax.f32 %v902, 0.0
        %v936 = vmax.f32 %v907, 0.0
        %v937 = vmax.f32 %v912, 0.0
        %v938 = vstv %s933
        %v939 = vmul.f32 %v938, %v934
        %v940 = vmul.f32 %v938, %v935
        %v941 = vmul.f32 %v938, %v936
        %v942 = vmul.f32 %v938, %v937
        %947 = vrot.lane.b32.xlu0 %v939, 120
        %v948 = vpop.permute.xlu0 %947
        %949 = vrot.lane.b32.xlu0 %v940, 120
        %v950 = vpop.permute.xlu0 %949
        %951 = vrot.lane.b32.xlu0 %v941, 120
        %v952 = vpop.permute.xlu0 %951
        %953 = vrot.lane.b32.xlu0 %v942, 120
        %v954 = vpop.permute.xlu0 %953
        %v959 = vadd.f32 %v929, %v948
        %v960 = vadd.f32 %v930, %v950
        %v961 = vadd.f32 %v931, %v952
        %v962 = vadd.f32 %v932, %v954
        %s963 = sld [smem:[#allocation3 + $0x85]]
        %v964 = vtanh.pop %v897
        %v965 = vtanh.pop %v902
        %v966 = vtanh.pop %v907
        %v967 = vtanh.pop %v912
        %v968 = vstv %s963
        %v969 = vmul.f32 %v968, %v964
        %v970 = vmul.f32 %v968, %v965
        %v971 = vmul.f32 %v968, %v966
        %v972 = vmul.f32 %v968, %v967
        %977 = vrot.lane.b32.xlu0 %v969, 112
        %v978 = vpop.permute.xlu0 %977
        %979 = vrot.lane.b32.xlu0 %v970, 112
        %v980 = vpop.permute.xlu0 %979
        %981 = vrot.lane.b32.xlu0 %v971, 112
        %v982 = vpop.permute.xlu0 %981
        %983 = vrot.lane.b32.xlu0 %v972, 112
        %v984 = vpop.permute.xlu0 %983
        %v989 = vadd.f32 %v959, %v978
        %v990 = vadd.f32 %v960, %v980
        %v991 = vadd.f32 %v961, %v982
        %v992 = vadd.f32 %v962, %v984
        %s993 = sld [smem:[#allocation3 + $0x86]]
        %v994 = vxor.u32 %v897, 2147483648
        %v995 = vxor.u32 %v902, 2147483648
        %v996 = vxor.u32 %v907, 2147483648
        %v997 = vxor.u32 %v912, 2147483648
        %v998 = vmul.f32 %v994, 1.442695
        %v999 = vpow.pop %v998
        %v1000 = vmul.f32 %v995, 1.442695
        %v1001 = vpow.pop %v1000
        %v1002 = vmul.f32 %v996, 1.442695
        %v1003 = vpow.pop %v1002
        %v1004 = vmul.f32 %v997, 1.442695
        %v1005 = vpow.pop %v1004
        %v1006 = vadd.f32 %v999, 1.0
        %v1007 = vadd.f32 %v1001, 1.0
        %v1008 = vadd.f32 %v1003, 1.0
        %v1009 = vadd.f32 %v1005, 1.0
        %v1010 = vrcp.pop %v1006
        %v1011 = vmul.f32 1.0, %v1010
        %v1012 = vrcp.pop %v1007
        %v1013 = vmul.f32 1.0, %v1012
        %v1014 = vrcp.pop %v1008
        %v1015 = vmul.f32 1.0, %v1014
        %v1016 = vrcp.pop %v1009
        %v1017 = vmul.f32 1.0, %v1016
        %v1018 = vstv %s993
        %v1019 = vmul.f32 %v1018, %v1011
        %v1020 = vmul.f32 %v1018, %v1013
        %v1021 = vmul.f32 %v1018, %v1015
        %v1022 = vmul.f32 %v1018, %v1017
        %1027 = vrot.lane.b32.xlu0 %v1019, 104
        %v1028 = vpop.permute.xlu0 %1027
        %1029 = vrot.lane.b32.xlu0 %v1020, 104
        %v1030 = vpop.permute.xlu0 %1029
        %1031 = vrot.lane.b32.xlu0 %v1021, 104
        %v1032 = vpop.permute.xlu0 %1031
        %1033 = vrot.lane.b32.xlu0 %v1022, 104
        %v1034 = vpop.permute.xlu0 %1033
        %v1039 = vadd.f32 %v989, %v1028
        %v1040 = vadd.f32 %v990, %v1030
        %v1041 = vadd.f32 %v991, %v1032
        %v1042 = vadd.f32 %v992, %v1034
        %s1043 = sld [smem:[#allocation3 + $0x87]]
        %v1044 = vmul.f32 %v897, 1.442695
        %v1045 = vpow.pop %v1044
        %v1046 = vmul.f32 %v902, 1.442695
        %v1047 = vpow.pop %v1046
        %v1048 = vmul.f32 %v907, 1.442695
        %v1049 = vpow.pop %v1048
        %v1050 = vmul.f32 %v912, 1.442695
        %v1051 = vpow.pop %v1050
        %v1052 = vstv %s1043
        %v1053 = vmul.f32 %v1052, %v1045
        %v1054 = vmul.f32 %v1052, %v1047
        %v1055 = vmul.f32 %v1052, %v1049
        %v1056 = vmul.f32 %v1052, %v1051
        %1061 = vrot.lane.b32.xlu0 %v1053, 96
        %v1062 = vpop.permute.xlu0 %1061
        %1063 = vrot.lane.b32.xlu0 %v1054, 96
        %v1064 = vpop.permute.xlu0 %1063
        %1065 = vrot.lane.b32.xlu0 %v1055, 96
        %v1066 = vpop.permute.xlu0 %1065
        %1067 = vrot.lane.b32.xlu0 %v1056, 96
        %v1068 = vpop.permute.xlu0 %1067
        %v1073 = vadd.f32 %v1039, %v1062
        %v1074 = vadd.f32 %v1040, %v1064
        %v1075 = vadd.f32 %v1041, %v1066
        %v1076 = vadd.f32 %v1042, %v1068
        %v1077 = vadd.f32 %v515, %v1073
        %v1078 = vadd.f32 %v516, %v1074
        %v1079 = vadd.f32 %v517, %v1075
        %v1080 = vadd.f32 %v518, %v1076
        %s1081 = sld [smem:[#allocation3 + $0x181]]
        %s1082 = sld [smem:[#allocation3 + $0x182]]
        %s1083 = ssub.f32 %s1081, %s1082
        %v1084 = vstv %s1083
        %v1085 = vmul.f32 %v1084, %v804
        %v1086 = vmul.f32 %v1084, %v805
        %v1087 = vmul.f32 %v1084, %v806
        %v1088 = vmul.f32 %v1084, %v807
        %s1089 = sld [smem:[#allocation3 + $0x183]]
        %v1090 = vstv %s1089
        %v1091 = vmul.f32 %v1090, %v897
        %v1092 = vmul.f32 %v1090, %v902
        %v1093 = vmul.f32 %v1090, %v907
        %v1094 = vmul.f32 %v1090, %v912
        %1099 = vrot.lane.b32.xlu0 %v1091, 88
        %v1100 = vpop.permute.xlu0 %1099
        %1101 = vrot.lane.b32.xlu0 %v1092, 88
        %v1102 = vpop.permute.xlu0 %1101
        %1103 = vrot.lane.b32.xlu0 %v1093, 88
        %v1104 = vpop.permute.xlu0 %1103
        %1105 = vrot.lane.b32.xlu0 %v1094, 88
        %v1106 = vpop.permute.xlu0 %1105
        %v1111 = vadd.f32 %v1085, %v1100
        %v1112 = vadd.f32 %v1086, %v1102
        %v1113 = vadd.f32 %v1087, %v1104
        %v1114 = vadd.f32 %v1088, %v1106
        %s1115 = sld [smem:[#allocation3 + $0x184]]
        %v1116 = vstv %s1115
        %v1117 = vmul.f32 %v1116, %v934
        %v1118 = vmul.f32 %v1116, %v935
        %v1119 = vmul.f32 %v1116, %v936
        %v1120 = vmul.f32 %v1116, %v937
        %1125 = vrot.lane.b32.xlu0 %v1117, 80
        %v1126 = vpop.permute.xlu0 %1125
        %1127 = vrot.lane.b32.xlu0 %v1118, 80
        %v1128 = vpop.permute.xlu0 %1127
        %1129 = vrot.lane.b32.xlu0 %v1119, 80
        %v1130 = vpop.permute.xlu0 %1129
        %1131 = vrot.lane.b32.xlu0 %v1120, 80
        %v1132 = vpop.permute.xlu0 %1131
        %v1137 = vadd.f32 %v1111, %v1126
        %v1138 = vadd.f32 %v1112, %v1128
        %v1139 = vadd.f32 %v1113, %v1130
        %v1140 = vadd.f32 %v1114, %v1132
        %s1141 = sld [smem:[#allocation3 + $0x185]]
        %v1142 = vstv %s1141
        %v1143 = vmul.f32 %v1142, %v964
        %v1144 = vmul.f32 %v1142, %v965
        %v1145 = vmul.f32 %v1142, %v966
        %v1146 = vmul.f32 %v1142, %v967
        %1151 = vrot.lane.b32.xlu0 %v1143, 72
        %v1152 = vpop.permute.xlu0 %1151
        %1153 = vrot.lane.b32.xlu0 %v1144, 72
        %v1154 = vpop.permute.xlu0 %1153
        %1155 = vrot.lane.b32.xlu0 %v1145, 72
        %v1156 = vpop.permute.xlu0 %1155
        %1157 = vrot.lane.b32.xlu0 %v1146, 72
        %v1158 = vpop.permute.xlu0 %1157
        %v1163 = vadd.f32 %v1137, %v1152
        %v1164 = vadd.f32 %v1138, %v1154
        %v1165 = vadd.f32 %v1139, %v1156
        %v1166 = vadd.f32 %v1140, %v1158
        %s1167 = sld [smem:[#allocation3 + $0x186]]
        %v1168 = vstv %s1167
        %v1169 = vmul.f32 %v1168, %v1011
        %v1170 = vmul.f32 %v1168, %v1013
        %v1171 = vmul.f32 %v1168, %v1015
        %v1172 = vmul.f32 %v1168, %v1017
        %1177 = vrot.lane.b32.xlu0 %v1169, 64
        %v1178 = vpop.permute.xlu0 %1177
        %1179 = vrot.lane.b32.xlu0 %v1170, 64
        %v1180 = vpop.permute.xlu0 %1179
        %1181 = vrot.lane.b32.xlu0 %v1171, 64
        %v1182 = vpop.permute.xlu0 %1181
        %1183 = vrot.lane.b32.xlu0 %v1172, 64
        %v1184 = vpop.permute.xlu0 %1183
        %v1189 = vadd.f32 %v1163, %v1178
        %v1190 = vadd.f32 %v1164, %v1180
        %v1191 = vadd.f32 %v1165, %v1182
        %v1192 = vadd.f32 %v1166, %v1184
        %s1193 = sld [smem:[#allocation3 + $0x187]]
        %v1194 = vstv %s1193
        %v1195 = vmul.f32 %v1194, %v1045
        %v1196 = vmul.f32 %v1194, %v1047
        %v1197 = vmul.f32 %v1194, %v1049
        %v1198 = vmul.f32 %v1194, %v1051
        %1203 = vrot.lane.b32.xlu0 %v1195, 56
        %v1204 = vpop.permute.xlu0 %1203
        %1205 = vrot.lane.b32.xlu0 %v1196, 56
        %v1206 = vpop.permute.xlu0 %1205
        %1207 = vrot.lane.b32.xlu0 %v1197, 56
        %v1208 = vpop.permute.xlu0 %1207
        %1209 = vrot.lane.b32.xlu0 %v1198, 56
        %v1210 = vpop.permute.xlu0 %1209
        %v1215 = vadd.f32 %v1189, %v1204
        %v1216 = vadd.f32 %v1190, %v1206
        %v1217 = vadd.f32 %v1191, %v1208
        %v1218 = vadd.f32 %v1192, %v1210
        %v1219 = vadd.f32 %v657, %v1215
        %v1220 = vadd.f32 %v658, %v1216
        %v1221 = vadd.f32 %v659, %v1217
        %v1222 = vadd.f32 %v660, %v1218
        %s1223 = sld [smem:[#allocation3 + $0x301]]
        %s1224 = sld [smem:[#allocation3 + $0x302]]
        %s1225 = ssub.f32 %s1223, %s1224
        %v1226 = vstv %s1225
        %v1227 = vmul.f32 %v1226, %v804
        %v1228 = vmul.f32 %v1226, %v805
        %v1229 = vmul.f32 %v1226, %v806
        %v1230 = vmul.f32 %v1226, %v807
        %s1231 = sld [smem:[#allocation3 + $0x303]]
        %v1232 = vstv %s1231
        %v1233 = vmul.f32 %v1232, %v897
        %v1234 = vmul.f32 %v1232, %v902
        %v1235 = vmul.f32 %v1232, %v907
        %v1236 = vmul.f32 %v1232, %v912
        %1241 = vrot.lane.b32.xlu0 %v1233, 48
        %v1242 = vpop.permute.xlu0 %1241
        %1243 = vrot.lane.b32.xlu0 %v1234, 48
        %v1244 = vpop.permute.xlu0 %1243
        %1245 = vrot.lane.b32.xlu0 %v1235, 48
        %v1246 = vpop.permute.xlu0 %1245
        %1247 = vrot.lane.b32.xlu0 %v1236, 48
        %v1248 = vpop.permute.xlu0 %1247
        %v1253 = vadd.f32 %v1227, %v1242
        %v1254 = vadd.f32 %v1228, %v1244
        %v1255 = vadd.f32 %v1229, %v1246
        %v1256 = vadd.f32 %v1230, %v1248
        %s1257 = sld [smem:[#allocation3 + $0x304]]
        %v1258 = vstv %s1257
        %v1259 = vmul.f32 %v1258, %v934
        %v1260 = vmul.f32 %v1258, %v935
        %v1261 = vmul.f32 %v1258, %v936
        %v1262 = vmul.f32 %v1258, %v937
        %1267 = vrot.lane.b32.xlu0 %v1259, 40
        %v1268 = vpop.permute.xlu0 %1267
        %1269 = vrot.lane.b32.xlu0 %v1260, 40
        %v1270 = vpop.permute.xlu0 %1269
        %1271 = vrot.lane.b32.xlu0 %v1261, 40
        %v1272 = vpop.permute.xlu0 %1271
        %1273 = vrot.lane.b32.xlu0 %v1262, 40
        %v1274 = vpop.permute.xlu0 %1273
        %v1279 = vadd.f32 %v1253, %v1268
        %v1280 = vadd.f32 %v1254, %v1270
        %v1281 = vadd.f32 %v1255, %v1272
        %v1282 = vadd.f32 %v1256, %v1274
        %s1283 = sld [smem:[#allocation3 + $0x305]]
        %v1284 = vstv %s1283
        %v1285 = vmul.f32 %v1284, %v964
        %v1286 = vmul.f32 %v1284, %v965
        %v1287 = vmul.f32 %v1284, %v966
        %v1288 = vmul.f32 %v1284, %v967
        %1293 = vrot.lane.b32.xlu0 %v1285, 32
        %v1294 = vpop.permute.xlu0 %1293
        %1295 = vrot.lane.b32.xlu0 %v1286, 32
        %v1296 = vpop.permute.xlu0 %1295
        %1297 = vrot.lane.b32.xlu0 %v1287, 32
        %v1298 = vpop.permute.xlu0 %1297
        %1299 = vrot.lane.b32.xlu0 %v1288, 32
        %v1300 = vpop.permute.xlu0 %1299
        %v1305 = vadd.f32 %v1279, %v1294
        %v1306 = vadd.f32 %v1280, %v1296
        %v1307 = vadd.f32 %v1281, %v1298
        %v1308 = vadd.f32 %v1282, %v1300
        %s1309 = sld [smem:[#allocation3 + $0x306]]
        %v1310 = vstv %s1309
        %v1311 = vmul.f32 %v1310, %v1011
        %v1312 = vmul.f32 %v1310, %v1013
        %v1313 = vmul.f32 %v1310, %v1015
        %v1314 = vmul.f32 %v1310, %v1017
        %1319 = vrot.lane.b32.xlu0 %v1311, 24
        %v1320 = vpop.permute.xlu0 %1319
        %1321 = vrot.lane.b32.xlu0 %v1312, 24
        %v1322 = vpop.permute.xlu0 %1321
        %1323 = vrot.lane.b32.xlu0 %v1313, 24
        %v1324 = vpop.permute.xlu0 %1323
        %1325 = vrot.lane.b32.xlu0 %v1314, 24
        %v1326 = vpop.permute.xlu0 %1325
        %v1331 = vadd.f32 %v1305, %v1320
        %v1332 = vadd.f32 %v1306, %v1322
        %v1333 = vadd.f32 %v1307, %v1324
        %v1334 = vadd.f32 %v1308, %v1326
        %s1335 = sld [smem:[#allocation3 + $0x307]]
        %v1336 = vstv %s1335
        %v1337 = vmul.f32 %v1336, %v1045
        %v1338 = vmul.f32 %v1336, %v1047
        %v1339 = vmul.f32 %v1336, %v1049
        %v1340 = vmul.f32 %v1336, %v1051
        %1345 = vrot.lane.b32.xlu0 %v1337, 16
        %v1346 = vpop.permute.xlu0 %1345
        %1347 = vrot.lane.b32.xlu0 %v1338, 16
        %v1348 = vpop.permute.xlu0 %1347
        %1349 = vrot.lane.b32.xlu0 %v1339, 16
        %v1350 = vpop.permute.xlu0 %1349
        %1351 = vrot.lane.b32.xlu0 %v1340, 16
        %v1352 = vpop.permute.xlu0 %1351
        %v1357 = vadd.f32 %v1331, %v1346
        %v1358 = vadd.f32 %v1332, %v1348
        %v1359 = vadd.f32 %v1333, %v1350
        %v1360 = vadd.f32 %v1334, %v1352
        %v1361 = vadd.f32 %v799, %v1357
        %v1362 = vadd.f32 %v800, %v1358
        %v1363 = vadd.f32 %v801, %v1359
        %v1364 = vadd.f32 %v802, %v1360
        %1365 = vst.msk [vmem:[%s241] sm:$0xff] %vm255, %v1077
        %1366 = vst.msk [vmem:[%s241 + $0x8] sm:$0xff] %vm255, %v1078
        %1367 = vst.msk [vmem:[%s241 + $0x10] sm:$0xff] %vm255, %v1079
        %1368 = vst.msk [vmem:[%s241 + $0x18] sm:$0xff] %vm255, %v1080
        %s1369 = scalar_lea.vmem %s2, 16
        %v1370 = vld [vmem:[%s1369] sm:$0xff]
        %s1371 = scalar_lea.vmem %s3, 2
        %v1372 = vld [vmem:[%s1371] sm:$0x1]
        %v1374 = vlaneseq
        %v1375 = vshrl.u32 %v1374, 7
        %v1376 = vsub.s32 0, %v1375
        %v1377 = vrot.slane %v1372, %v1376
        %v1380 = vsel %vm255, %v1077, 0
        %v1383 = vsel %vm255, %v1078, 0
        %v1386 = vsel %vm255, %v1079, 0
        %v1389 = vsel %vm255, %v1080, 0
        %1391 = vmatprep.subr.mxu0 0.0
        %1392 = vmatpush1.msra.mxu0 %v1370
        %1393 = vmatprep.subr.mxu0 0.0
        %1394 = vmatpush1.msra.mxu0 0.0
        %1395 = vmatprep.subr.mxu0 0.0
        %1396 = vmatpush1.msra.mxu0 0.0
        %1397 = vmatprep.subr.mxu0 0.0
        %1398 = vmatpush1.msra.mxu0 0.0
        %1399 = vmatprep.subr.mxu0 0.0
        %1400 = vmatpush1.msra.mxu0 0.0
        %1401 = vmatprep.subr.mxu0 0.0
        %1402 = vmatpush1.msra.mxu0 0.0
        %1403 = vmatprep.subr.mxu0 0.0
        %1404 = vmatpush1.msra.mxu0 0.0
        %1405 = vmatprep.subr.mxu0 0.0
        %1406 = vmatpush1.msra.mxu0 0.0
        %1407 = vmatprep.subr.mxu0 0.0
        %1408 = vmatpush1.msra.mxu0 0.0
        %1409 = vmatprep.subr.mxu0 0.0
        %1410 = vmatpush1.msra.mxu0 0.0
        %1411 = vmatprep.subr.mxu0 0.0
        %1412 = vmatpush1.msra.mxu0 0.0
        %1413 = vmatprep.subr.mxu0 0.0
        %1414 = vmatpush1.msra.mxu0 0.0
        %1415 = vmatprep.subr.mxu0 0.0
        %1416 = vmatpush1.msra.mxu0 0.0
        %1417 = vmatprep.subr.mxu0 0.0
        %1418 = vmatpush1.msra.mxu0 0.0
        %1419 = vmatprep.subr.mxu0 0.0
        %1420 = vmatpush1.msra.mxu0 0.0
        %1421 = vmatprep.subr.mxu0 0.0
        %1422 = vmatpush1.msra.mxu0 0.0
        %1423 = vmatprep.subr.mxu0 0.0
        %1424 = vmatpush1.msra.mxu0 0.0
        %1425 = vmatprep.subr.mxu0 0.0
        %1426 = vmatpush1.msra.mxu0 0.0
        %1427 = vmatprep.subr.mxu0 0.0
        %1428 = vmatpush1.msra.mxu0 0.0
        %1429 = vmatprep.subr.mxu0 0.0
        %1430 = vmatpush1.msra.mxu0 0.0
        %1431 = vmatprep.subr.mxu0 0.0
        %1432 = vmatpush1.msra.mxu0 0.0
        %1433 = vmatprep.subr.mxu0 0.0
        %1434 = vmatpush1.msra.mxu0 0.0
        %1435 = vmatprep.subr.mxu0 0.0
        %1436 = vmatpush1.msra.mxu0 0.0
        %1437 = vmatprep.subr.mxu0 0.0
        %1438 = vmatpush1.msra.mxu0 0.0
        %1439 = vmatprep.subr.mxu0 0.0
        %1440 = vmatpush1.msra.mxu0 0.0
        %1441 = vmatprep.subr.mxu0 0.0
        %1442 = vmatpush1.msra.mxu0 0.0
        %1443 = vmatprep.subr.mxu0 0.0
        %1444 = vmatpush1.msra.mxu0 0.0
        %1445 = vmatprep.subr.mxu0 0.0
        %1446 = vmatpush1.msra.mxu0 0.0
        %1447 = vmatprep.subr.mxu0 0.0
        %1448 = vmatpush1.msra.mxu0 0.0
        %1449 = vmatprep.subr.mxu0 0.0
        %1450 = vmatpush1.msra.mxu0 0.0
        %1451 = vmatprep.subr.mxu0 0.0
        %1452 = vmatpush1.msra.mxu0 0.0
        %1453 = vmatprep.subr.mxu0 0.0
        %1454 = vmatpush1.msra.mxu0 0.0
        %1455 = vmatprep.mubr.f32.mxu0 0.0
        %1456 = vmatmul.mubr.f32.gmra.mrb[0].mxu0 %v1380
        %v1457 = vpop.f32.mrb[0].mxu0
        %v1458 = vadd.f32 %v1377, %v1457
        %v1459 = vpop.f32.mrb[0].mxu0
        %1460 = vmatprep.mubr.f32.mxu0 0.0
        %1461 = vmatmul.mubr.f32.gmra.mrb[0].mxu0 %v1383
        %v1462 = vpop.f32.mrb[0].mxu0
        %v1463 = vadd.f32 %v1377, %v1462
        %v1464 = vpop.f32.mrb[0].mxu0
        %1465 = vmatprep.mubr.f32.mxu0 0.0
        %1466 = vmatmul.mubr.f32.gmra.mrb[0].mxu0 %v1386
        %v1467 = vpop.f32.mrb[0].mxu0
        %v1468 = vadd.f32 %v1377, %v1467
        %v1469 = vpop.f32.mrb[0].mxu0
        %1470 = vmatprep.mubr.f32.mxu0 0.0
        %1471 = vmatmul.mubr.f32.gmra.mrb[0].mxu0 %v1389
        %v1472 = vpop.f32.mrb[0].mxu0
        %v1473 = vadd.f32 %v1377, %v1472
        %v1474 = vpop.f32.mrb[0].mxu0
        %1475 = vdwg.mxu0
        %s1476 = sld [smem:[#allocation3 + $0x201]]
        %s1477 = sld [smem:[#allocation3 + $0x202]]
        %s1478 = ssub.f32 %s1476, %s1477
        %v1479 = vstv %s1478
        %v1480 = vmul.f32 %v1479, %v1077
        %v1481 = vmul.f32 %v1479, %v1078
        %v1482 = vmul.f32 %v1479, %v1079
        %v1483 = vmul.f32 %v1479, %v1080
        %s1484 = sld [smem:[#allocation3 + $0x203]]
        %v1485 = vstv %s1484
        %v1486 = vmul.f32 %v1485, %v1458
        %v1487 = vmul.f32 %v1485, %v1463
        %v1488 = vmul.f32 %v1485, %v1468
        %v1489 = vmul.f32 %v1485, %v1473
        %v1490 = vadd.f32 %v1480, %v1486
        %v1491 = vadd.f32 %v1481, %v1487
        %v1492 = vadd.f32 %v1482, %v1488
        %v1493 = vadd.f32 %v1483, %v1489
        %s1494 = sld [smem:[#allocation3 + $0x204]]
        %v1495 = vmax.f32 %v1458, 0.0
        %v1496 = vmax.f32 %v1463, 0.0
        %v1497 = vmax.f32 %v1468, 0.0
        %v1498 = vmax.f32 %v1473, 0.0
        %v1499 = vstv %s1494
        %v1500 = vmul.f32 %v1499, %v1495
        %v1501 = vmul.f32 %v1499, %v1496
        %v1502 = vmul.f32 %v1499, %v1497
        %v1503 = vmul.f32 %v1499, %v1498
        %1508 = vrot.lane.b32.xlu0 %v1500, 120
        %v1509 = vpop.permute.xlu0 %1508
        %1510 = vrot.lane.b32.xlu0 %v1501, 120
        %v1511 = vpop.permute.xlu0 %1510
        %1512 = vrot.lane.b32.xlu0 %v1502, 120
        %v1513 = vpop.permute.xlu0 %1512
        %1514 = vrot.lane.b32.xlu0 %v1503, 120
        %v1515 = vpop.permute.xlu0 %1514
        %v1520 = vadd.f32 %v1490, %v1509
        %v1521 = vadd.f32 %v1491, %v1511
        %v1522 = vadd.f32 %v1492, %v1513
        %v1523 = vadd.f32 %v1493, %v1515
        %s1524 = sld [smem:[#allocation3 + $0x205]]
        %v1525 = vtanh.pop %v1458
        %v1526 = vtanh.pop %v1463
        %v1527 = vtanh.pop %v1468
        %v1528 = vtanh.pop %v1473
        %v1529 = vstv %s1524
        %v1530 = vmul.f32 %v1529, %v1525
        %v1531 = vmul.f32 %v1529, %v1526
        %v1532 = vmul.f32 %v1529, %v1527
        %v1533 = vmul.f32 %v1529, %v1528
        %1538 = vrot.lane.b32.xlu0 %v1530, 112
        %v1539 = vpop.permute.xlu0 %1538
        %1540 = vrot.lane.b32.xlu0 %v1531, 112
        %v1541 = vpop.permute.xlu0 %1540
        %1542 = vrot.lane.b32.xlu0 %v1532, 112
        %v1543 = vpop.permute.xlu0 %1542
        %1544 = vrot.lane.b32.xlu0 %v1533, 112
        %v1545 = vpop.permute.xlu0 %1544
        %v1550 = vadd.f32 %v1520, %v1539
        %v1551 = vadd.f32 %v1521, %v1541
        %v1552 = vadd.f32 %v1522, %v1543
        %v1553 = vadd.f32 %v1523, %v1545
        %s1554 = sld [smem:[#allocation3 + $0x206]]
        %v1555 = vxor.u32 %v1458, 2147483648
        %v1556 = vxor.u32 %v1463, 2147483648
        %v1557 = vxor.u32 %v1468, 2147483648
        %v1558 = vxor.u32 %v1473, 2147483648
        %v1559 = vmul.f32 %v1555, 1.442695
        %v1560 = vpow.pop %v1559
        %v1561 = vmul.f32 %v1556, 1.442695
        %v1562 = vpow.pop %v1561
        %v1563 = vmul.f32 %v1557, 1.442695
        %v1564 = vpow.pop %v1563
        %v1565 = vmul.f32 %v1558, 1.442695
        %v1566 = vpow.pop %v1565
        %v1567 = vadd.f32 %v1560, 1.0
        %v1568 = vadd.f32 %v1562, 1.0
        %v1569 = vadd.f32 %v1564, 1.0
        %v1570 = vadd.f32 %v1566, 1.0
        %v1571 = vrcp.pop %v1567
        %v1572 = vmul.f32 1.0, %v1571
        %v1573 = vrcp.pop %v1568
        %v1574 = vmul.f32 1.0, %v1573
        %v1575 = vrcp.pop %v1569
        %v1576 = vmul.f32 1.0, %v1575
        %v1577 = vrcp.pop %v1570
        %v1578 = vmul.f32 1.0, %v1577
        %v1579 = vstv %s1554
        %v1580 = vmul.f32 %v1579, %v1572
        %v1581 = vmul.f32 %v1579, %v1574
        %v1582 = vmul.f32 %v1579, %v1576
        %v1583 = vmul.f32 %v1579, %v1578
        %1588 = vrot.lane.b32.xlu0 %v1580, 104
        %v1589 = vpop.permute.xlu0 %1588
        %1590 = vrot.lane.b32.xlu0 %v1581, 104
        %v1591 = vpop.permute.xlu0 %1590
        %1592 = vrot.lane.b32.xlu0 %v1582, 104
        %v1593 = vpop.permute.xlu0 %1592
        %1594 = vrot.lane.b32.xlu0 %v1583, 104
        %v1595 = vpop.permute.xlu0 %1594
        %v1600 = vadd.f32 %v1550, %v1589
        %v1601 = vadd.f32 %v1551, %v1591
        %v1602 = vadd.f32 %v1552, %v1593
        %v1603 = vadd.f32 %v1553, %v1595
        %s1604 = sld [smem:[#allocation3 + $0x207]]
        %v1605 = vmul.f32 %v1458, 1.442695
        %v1606 = vpow.pop %v1605
        %v1607 = vmul.f32 %v1463, 1.442695
        %v1608 = vpow.pop %v1607
        %v1609 = vmul.f32 %v1468, 1.442695
        %v1610 = vpow.pop %v1609
        %v1611 = vmul.f32 %v1473, 1.442695
        %v1612 = vpow.pop %v1611
        %v1613 = vstv %s1604
        %v1614 = vmul.f32 %v1613, %v1606
        %v1615 = vmul.f32 %v1613, %v1608
        %v1616 = vmul.f32 %v1613, %v1610
        %v1617 = vmul.f32 %v1613, %v1612
        %1622 = vrot.lane.b32.xlu0 %v1614, 96
        %v1623 = vpop.permute.xlu0 %1622
        %1624 = vrot.lane.b32.xlu0 %v1615, 96
        %v1625 = vpop.permute.xlu0 %1624
        %1626 = vrot.lane.b32.xlu0 %v1616, 96
        %v1627 = vpop.permute.xlu0 %1626
        %1628 = vrot.lane.b32.xlu0 %v1617, 96
        %v1629 = vpop.permute.xlu0 %1628
        %v1634 = vadd.f32 %v1600, %v1623
        %v1635 = vadd.f32 %v1601, %v1625
        %v1636 = vadd.f32 %v1602, %v1627
        %v1637 = vadd.f32 %v1603, %v1629
        %v1638 = vadd.f32 %v1219, %v1634
        %v1639 = vadd.f32 %v1220, %v1635
        %v1640 = vadd.f32 %v1221, %v1636
        %v1641 = vadd.f32 %v1222, %v1637
        %s1642 = sld [smem:[#allocation3 + $0x381]]
        %s1643 = sld [smem:[#allocation3 + $0x382]]
        %s1644 = ssub.f32 %s1642, %s1643
        %v1645 = vstv %s1644
        %v1646 = vmul.f32 %v1645, %v1077
        %v1647 = vmul.f32 %v1645, %v1078
        %v1648 = vmul.f32 %v1645, %v1079
        %v1649 = vmul.f32 %v1645, %v1080
        %s1650 = sld [smem:[#allocation3 + $0x383]]
        %v1651 = vstv %s1650
        %v1652 = vmul.f32 %v1651, %v1458
        %v1653 = vmul.f32 %v1651, %v1463
        %v1654 = vmul.f32 %v1651, %v1468
        %v1655 = vmul.f32 %v1651, %v1473
        %1660 = vrot.lane.b32.xlu0 %v1652, 88
        %v1661 = vpop.permute.xlu0 %1660
        %1662 = vrot.lane.b32.xlu0 %v1653, 88
        %v1663 = vpop.permute.xlu0 %1662
        %1664 = vrot.lane.b32.xlu0 %v1654, 88
        %v1665 = vpop.permute.xlu0 %1664
        %1666 = vrot.lane.b32.xlu0 %v1655, 88
        %v1667 = vpop.permute.xlu0 %1666
        %v1672 = vadd.f32 %v1646, %v1661
        %v1673 = vadd.f32 %v1647, %v1663
        %v1674 = vadd.f32 %v1648, %v1665
        %v1675 = vadd.f32 %v1649, %v1667
        %s1676 = sld [smem:[#allocation3 + $0x384]]
        %v1677 = vstv %s1676
        %v1678 = vmul.f32 %v1677, %v1495
        %v1679 = vmul.f32 %v1677, %v1496
        %v1680 = vmul.f32 %v1677, %v1497
        %v1681 = vmul.f32 %v1677, %v1498
        %1686 = vrot.lane.b32.xlu0 %v1678, 80
        %v1687 = vpop.permute.xlu0 %1686
        %1688 = vrot.lane.b32.xlu0 %v1679, 80
        %v1689 = vpop.permute.xlu0 %1688
        %1690 = vrot.lane.b32.xlu0 %v1680, 80
        %v1691 = vpop.permute.xlu0 %1690
        %1692 = vrot.lane.b32.xlu0 %v1681, 80
        %v1693 = vpop.permute.xlu0 %1692
        %v1698 = vadd.f32 %v1672, %v1687
        %v1699 = vadd.f32 %v1673, %v1689
        %v1700 = vadd.f32 %v1674, %v1691
        %v1701 = vadd.f32 %v1675, %v1693
        %s1702 = sld [smem:[#allocation3 + $0x385]]
        %v1703 = vstv %s1702
        %v1704 = vmul.f32 %v1703, %v1525
        %v1705 = vmul.f32 %v1703, %v1526
        %v1706 = vmul.f32 %v1703, %v1527
        %v1707 = vmul.f32 %v1703, %v1528
        %1712 = vrot.lane.b32.xlu0 %v1704, 72
        %v1713 = vpop.permute.xlu0 %1712
        %1714 = vrot.lane.b32.xlu0 %v1705, 72
        %v1715 = vpop.permute.xlu0 %1714
        %1716 = vrot.lane.b32.xlu0 %v1706, 72
        %v1717 = vpop.permute.xlu0 %1716
        %1718 = vrot.lane.b32.xlu0 %v1707, 72
        %v1719 = vpop.permute.xlu0 %1718
        %v1724 = vadd.f32 %v1698, %v1713
        %v1725 = vadd.f32 %v1699, %v1715
        %v1726 = vadd.f32 %v1700, %v1717
        %v1727 = vadd.f32 %v1701, %v1719
        %s1728 = sld [smem:[#allocation3 + $0x386]]
        %v1729 = vstv %s1728
        %v1730 = vmul.f32 %v1729, %v1572
        %v1731 = vmul.f32 %v1729, %v1574
        %v1732 = vmul.f32 %v1729, %v1576
        %v1733 = vmul.f32 %v1729, %v1578
        %1738 = vrot.lane.b32.xlu0 %v1730, 64
        %v1739 = vpop.permute.xlu0 %1738
        %1740 = vrot.lane.b32.xlu0 %v1731, 64
        %v1741 = vpop.permute.xlu0 %1740
        %1742 = vrot.lane.b32.xlu0 %v1732, 64
        %v1743 = vpop.permute.xlu0 %1742
        %1744 = vrot.lane.b32.xlu0 %v1733, 64
        %v1745 = vpop.permute.xlu0 %1744
        %v1750 = vadd.f32 %v1724, %v1739
        %v1751 = vadd.f32 %v1725, %v1741
        %v1752 = vadd.f32 %v1726, %v1743
        %v1753 = vadd.f32 %v1727, %v1745
        %s1754 = sld [smem:[#allocation3 + $0x387]]
        %v1755 = vstv %s1754
        %v1756 = vmul.f32 %v1755, %v1606
        %v1757 = vmul.f32 %v1755, %v1608
        %v1758 = vmul.f32 %v1755, %v1610
        %v1759 = vmul.f32 %v1755, %v1612
        %1764 = vrot.lane.b32.xlu0 %v1756, 56
        %v1765 = vpop.permute.xlu0 %1764
        %1766 = vrot.lane.b32.xlu0 %v1757, 56
        %v1767 = vpop.permute.xlu0 %1766
        %1768 = vrot.lane.b32.xlu0 %v1758, 56
        %v1769 = vpop.permute.xlu0 %1768
        %1770 = vrot.lane.b32.xlu0 %v1759, 56
        %v1771 = vpop.permute.xlu0 %1770
        %v1776 = vadd.f32 %v1750, %v1765
        %v1777 = vadd.f32 %v1751, %v1767
        %v1778 = vadd.f32 %v1752, %v1769
        %v1779 = vadd.f32 %v1753, %v1771
        %v1780 = vadd.f32 %v1361, %v1776
        %v1781 = vadd.f32 %v1362, %v1777
        %v1782 = vadd.f32 %v1363, %v1778
        %v1783 = vadd.f32 %v1364, %v1779
        %1788 = vrot.lane.b32.xlu0 %v1638, 8
        %v1789 = vpop.permute.xlu0 %1788
        %1790 = vrot.lane.b32.xlu0 %v1639, 8
        %v1791 = vpop.permute.xlu0 %1790
        %1792 = vrot.lane.b32.xlu0 %v1640, 8
        %v1793 = vpop.permute.xlu0 %1792
        %1794 = vrot.lane.b32.xlu0 %v1641, 8
        %v1795 = vpop.permute.xlu0 %1794
        %vm1800 = vcmask 130112
        %1801 = vst.msk [vmem:[%s241] sm:$0xff] %vm1800, %v1789
        %1802 = vst.msk [vmem:[%s241 + $0x8] sm:$0xff] %vm1800, %v1791
        %1803 = vst.msk [vmem:[%s241 + $0x10] sm:$0xff] %vm1800, %v1793
        %1804 = vst.msk [vmem:[%s241 + $0x18] sm:$0xff] %vm1800, %v1795
        %s1805 = scalar_lea.vmem %s2, 24
        %v1806 = vld [vmem:[%s1805] sm:$0xff]
        %s1807 = scalar_lea.vmem %s3, 3
        %v1808 = vld [vmem:[%s1807] sm:$0x1]
        %v1810 = vlaneseq
        %v1811 = vshrl.u32 %v1810, 7
        %v1812 = vsub.s32 0, %v1811
        %v1813 = vrot.slane %v1808, %v1812
        %v1815 = vsel %vm255, %v1638, 0
        %v1817 = vsel %vm255, %v1639, 0
        %v1819 = vsel %vm255, %v1640, 0
        %v1821 = vsel %vm255, %v1641, 0
        %1823 = vmatprep.subr.mxu0 0.0
        %1824 = vmatpush1.msra.mxu0 %v1806
        %1825 = vmatprep.subr.mxu0 0.0
        %1826 = vmatpush1.msra.mxu0 0.0
        %1827 = vmatprep.subr.mxu0 0.0
        %1828 = vmatpush1.msra.mxu0 0.0
        %1829 = vmatprep.subr.mxu0 0.0
        %1830 = vmatpush1.msra.mxu0 0.0
        %1831 = vmatprep.subr.mxu0 0.0
        %1832 = vmatpush1.msra.mxu0 0.0
        %1833 = vmatprep.subr.mxu0 0.0
        %1834 = vmatpush1.msra.mxu0 0.0
        %1835 = vmatprep.subr.mxu0 0.0
        %1836 = vmatpush1.msra.mxu0 0.0
        %1837 = vmatprep.subr.mxu0 0.0
        %1838 = vmatpush1.msra.mxu0 0.0
        %1839 = vmatprep.subr.mxu0 0.0
        %1840 = vmatpush1.msra.mxu0 0.0
        %1841 = vmatprep.subr.mxu0 0.0
        %1842 = vmatpush1.msra.mxu0 0.0
        %1843 = vmatprep.subr.mxu0 0.0
        %1844 = vmatpush1.msra.mxu0 0.0
        %1845 = vmatprep.subr.mxu0 0.0
        %1846 = vmatpush1.msra.mxu0 0.0
        %1847 = vmatprep.subr.mxu0 0.0
        %1848 = vmatpush1.msra.mxu0 0.0
        %1849 = vmatprep.subr.mxu0 0.0
        %1850 = vmatpush1.msra.mxu0 0.0
        %1851 = vmatprep.subr.mxu0 0.0
        %1852 = vmatpush1.msra.mxu0 0.0
        %1853 = vmatprep.subr.mxu0 0.0
        %1854 = vmatpush1.msra.mxu0 0.0
        %1855 = vmatprep.subr.mxu0 0.0
        %1856 = vmatpush1.msra.mxu0 0.0
        %1857 = vmatprep.subr.mxu0 0.0
        %1858 = vmatpush1.msra.mxu0 0.0
        %1859 = vmatprep.subr.mxu0 0.0
        %1860 = vmatpush1.msra.mxu0 0.0
        %1861 = vmatprep.subr.mxu0 0.0
        %1862 = vmatpush1.msra.mxu0 0.0
        %1863 = vmatprep.subr.mxu0 0.0
        %1864 = vmatpush1.msra.mxu0 0.0
        %1865 = vmatprep.subr.mxu0 0.0
        %1866 = vmatpush1.msra.mxu0 0.0
        %1867 = vmatprep.subr.mxu0 0.0
        %1868 = vmatpush1.msra.mxu0 0.0
        %1869 = vmatprep.subr.mxu0 0.0
        %1870 = vmatpush1.msra.mxu0 0.0
        %1871 = vmatprep.subr.mxu0 0.0
        %1872 = vmatpush1.msra.mxu0 0.0
        %1873 = vmatprep.subr.mxu0 0.0
        %1874 = vmatpush1.msra.mxu0 0.0
        %1875 = vmatprep.subr.mxu0 0.0
        %1876 = vmatpush1.msra.mxu0 0.0
        %1877 = vmatprep.subr.mxu0 0.0
        %1878 = vmatpush1.msra.mxu0 0.0
        %1879 = vmatprep.subr.mxu0 0.0
        %1880 = vmatpush1.msra.mxu0 0.0
        %1881 = vmatprep.subr.mxu0 0.0
        %1882 = vmatpush1.msra.mxu0 0.0
        %1883 = vmatprep.subr.mxu0 0.0
        %1884 = vmatpush1.msra.mxu0 0.0
        %1885 = vmatprep.subr.mxu0 0.0
        %1886 = vmatpush1.msra.mxu0 0.0
        %1887 = vmatprep.mubr.f32.mxu0 0.0
        %1888 = vmatmul.mubr.f32.gmra.mrb[0].mxu0 %v1815
        %v1889 = vpop.f32.mrb[0].mxu0
        %v1890 = vadd.f32 %v1813, %v1889
        %v1891 = vpop.f32.mrb[0].mxu0
        %1892 = vmatprep.mubr.f32.mxu0 0.0
        %1893 = vmatmul.mubr.f32.gmra.mrb[0].mxu0 %v1817
        %v1894 = vpop.f32.mrb[0].mxu0
        %v1895 = vadd.f32 %v1813, %v1894
        %v1896 = vpop.f32.mrb[0].mxu0
        %1897 = vmatprep.mubr.f32.mxu0 0.0
        %1898 = vmatmul.mubr.f32.gmra.mrb[0].mxu0 %v1819
        %v1899 = vpop.f32.mrb[0].mxu0
        %v1900 = vadd.f32 %v1813, %v1899
        %v1901 = vpop.f32.mrb[0].mxu0
        %1902 = vmatprep.mubr.f32.mxu0 0.0
        %1903 = vmatmul.mubr.f32.gmra.mrb[0].mxu0 %v1821
        %v1904 = vpop.f32.mrb[0].mxu0
        %v1905 = vadd.f32 %v1813, %v1904
        %v1906 = vpop.f32.mrb[0].mxu0
        %1907 = vdwg.mxu0
        %s1908 = sld [smem:[#allocation3 + $0x401]]
        %s1909 = sld [smem:[#allocation3 + $0x402]]
        %s1910 = ssub.f32 %s1908, %s1909
        %v1911 = vstv %s1910
        %v1912 = vmul.f32 %v1911, %v1638
        %v1913 = vmul.f32 %v1911, %v1639
        %v1914 = vmul.f32 %v1911, %v1640
        %v1915 = vmul.f32 %v1911, %v1641
        %s1916 = sld [smem:[#allocation3 + $0x403]]
        %v1917 = vstv %s1916
        %v1918 = vmul.f32 %v1917, %v1890
        %v1919 = vmul.f32 %v1917, %v1895
        %v1920 = vmul.f32 %v1917, %v1900
        %v1921 = vmul.f32 %v1917, %v1905
        %v1922 = vadd.f32 %v1912, %v1918
        %v1923 = vadd.f32 %v1913, %v1919
        %v1924 = vadd.f32 %v1914, %v1920
        %v1925 = vadd.f32 %v1915, %v1921
        %s1926 = sld [smem:[#allocation3 + $0x404]]
        %v1927 = vmax.f32 %v1890, 0.0
        %v1928 = vmax.f32 %v1895, 0.0
        %v1929 = vmax.f32 %v1900, 0.0
        %v1930 = vmax.f32 %v1905, 0.0
        %v1931 = vstv %s1926
        %v1932 = vmul.f32 %v1931, %v1927
        %v1933 = vmul.f32 %v1931, %v1928
        %v1934 = vmul.f32 %v1931, %v1929
        %v1935 = vmul.f32 %v1931, %v1930
        %1940 = vrot.lane.b32.xlu0 %v1932, 120
        %v1941 = vpop.permute.xlu0 %1940
        %1942 = vrot.lane.b32.xlu0 %v1933, 120
        %v1943 = vpop.permute.xlu0 %1942
        %1944 = vrot.lane.b32.xlu0 %v1934, 120
        %v1945 = vpop.permute.xlu0 %1944
        %1946 = vrot.lane.b32.xlu0 %v1935, 120
        %v1947 = vpop.permute.xlu0 %1946
        %v1952 = vadd.f32 %v1922, %v1941
        %v1953 = vadd.f32 %v1923, %v1943
        %v1954 = vadd.f32 %v1924, %v1945
        %v1955 = vadd.f32 %v1925, %v1947
        %s1956 = sld [smem:[#allocation3 + $0x405]]
        %v1957 = vtanh.pop %v1890
        %v1958 = vtanh.pop %v1895
        %v1959 = vtanh.pop %v1900
        %v1960 = vtanh.pop %v1905
        %v1961 = vstv %s1956
        %v1962 = vmul.f32 %v1961, %v1957
        %v1963 = vmul.f32 %v1961, %v1958
        %v1964 = vmul.f32 %v1961, %v1959
        %v1965 = vmul.f32 %v1961, %v1960
        %1970 = vrot.lane.b32.xlu0 %v1962, 112
        %v1971 = vpop.permute.xlu0 %1970
        %1972 = vrot.lane.b32.xlu0 %v1963, 112
        %v1973 = vpop.permute.xlu0 %1972
        %1974 = vrot.lane.b32.xlu0 %v1964, 112
        %v1975 = vpop.permute.xlu0 %1974
        %1976 = vrot.lane.b32.xlu0 %v1965, 112
        %v1977 = vpop.permute.xlu0 %1976
        %v1982 = vadd.f32 %v1952, %v1971
        %v1983 = vadd.f32 %v1953, %v1973
        %v1984 = vadd.f32 %v1954, %v1975
        %v1985 = vadd.f32 %v1955, %v1977
        %s1986 = sld [smem:[#allocation3 + $0x406]]
        %v1987 = vxor.u32 %v1890, 2147483648
        %v1988 = vxor.u32 %v1895, 2147483648
        %v1989 = vxor.u32 %v1900, 2147483648
        %v1990 = vxor.u32 %v1905, 2147483648
        %v1991 = vmul.f32 %v1987, 1.442695
        %v1992 = vpow.pop %v1991
        %v1993 = vmul.f32 %v1988, 1.442695
        %v1994 = vpow.pop %v1993
        %v1995 = vmul.f32 %v1989, 1.442695
        %v1996 = vpow.pop %v1995
        %v1997 = vmul.f32 %v1990, 1.442695
        %v1998 = vpow.pop %v1997
        %v1999 = vadd.f32 %v1992, 1.0
        %v2000 = vadd.f32 %v1994, 1.0
        %v2001 = vadd.f32 %v1996, 1.0
        %v2002 = vadd.f32 %v1998, 1.0
        %v2003 = vrcp.pop %v1999
        %v2004 = vmul.f32 1.0, %v2003
        %v2005 = vrcp.pop %v2000
        %v2006 = vmul.f32 1.0, %v2005
        %v2007 = vrcp.pop %v2001
        %v2008 = vmul.f32 1.0, %v2007
        %v2009 = vrcp.pop %v2002
        %v2010 = vmul.f32 1.0, %v2009
        %v2011 = vstv %s1986
        %v2012 = vmul.f32 %v2011, %v2004
        %v2013 = vmul.f32 %v2011, %v2006
        %v2014 = vmul.f32 %v2011, %v2008
        %v2015 = vmul.f32 %v2011, %v2010
        %2020 = vrot.lane.b32.xlu0 %v2012, 104
        %v2021 = vpop.permute.xlu0 %2020
        %2022 = vrot.lane.b32.xlu0 %v2013, 104
        %v2023 = vpop.permute.xlu0 %2022
        %2024 = vrot.lane.b32.xlu0 %v2014, 104
        %v2025 = vpop.permute.xlu0 %2024
        %2026 = vrot.lane.b32.xlu0 %v2015, 104
        %v2027 = vpop.permute.xlu0 %2026
        %v2032 = vadd.f32 %v1982, %v2021
        %v2033 = vadd.f32 %v1983, %v2023
        %v2034 = vadd.f32 %v1984, %v2025
        %v2035 = vadd.f32 %v1985, %v2027
        %s2036 = sld [smem:[#allocation3 + $0x407]]
        %v2037 = vmul.f32 %v1890, 1.442695
        %v2038 = vpow.pop %v2037
        %v2039 = vmul.f32 %v1895, 1.442695
        %v2040 = vpow.pop %v2039
        %v2041 = vmul.f32 %v1900, 1.442695
        %v2042 = vpow.pop %v2041
        %v2043 = vmul.f32 %v1905, 1.442695
        %v2044 = vpow.pop %v2043
        %v2045 = vstv %s2036
        %v2046 = vmul.f32 %v2045, %v2038
        %v2047 = vmul.f32 %v2045, %v2040
        %v2048 = vmul.f32 %v2045, %v2042
        %v2049 = vmul.f32 %v2045, %v2044
        %2054 = vrot.lane.b32.xlu0 %v2046, 96
        %v2055 = vpop.permute.xlu0 %2054
        %2056 = vrot.lane.b32.xlu0 %v2047, 96
        %v2057 = vpop.permute.xlu0 %2056
        %2058 = vrot.lane.b32.xlu0 %v2048, 96
        %v2059 = vpop.permute.xlu0 %2058
        %2060 = vrot.lane.b32.xlu0 %v2049, 96
        %v2061 = vpop.permute.xlu0 %2060
        %v2066 = vadd.f32 %v2032, %v2055
        %v2067 = vadd.f32 %v2033, %v2057
        %v2068 = vadd.f32 %v2034, %v2059
        %v2069 = vadd.f32 %v2035, %v2061
        %v2070 = vadd.f32 %v1780, %v2066
        %v2071 = vadd.f32 %v1781, %v2067
        %v2072 = vadd.f32 %v1782, %v2068
        %v2073 = vadd.f32 %v1783, %v2069
        %2078 = vrot.lane.b32.xlu0 %v2070, 16
        %v2079 = vpop.permute.xlu0 %2078
        %2080 = vrot.lane.b32.xlu0 %v2071, 16
        %v2081 = vpop.permute.xlu0 %2080
        %2082 = vrot.lane.b32.xlu0 %v2072, 16
        %v2083 = vpop.permute.xlu0 %2082
        %2084 = vrot.lane.b32.xlu0 %v2073, 16
        %v2085 = vpop.permute.xlu0 %2084
        %vm2090 = vcmask 195712
        %2091 = vst.msk [vmem:[%s241] sm:$0xff] %vm2090, %v2079
        %2092 = vst.msk [vmem:[%s241 + $0x8] sm:$0xff] %vm2090, %v2081
        %2093 = vst.msk [vmem:[%s241 + $0x10] sm:$0xff] %vm2090, %v2083
        %2094 = vst.msk [vmem:[%s241 + $0x18] sm:$0xff] %vm2090, %v2085
        %s2095 = smul.u32 4, %s21
        %p2096 = scmp.lt.s32.totalorder %s2095, 7
        %s2097 = scalar_select %p2096, %s2095, 7
        %s2098 = smul.addr %s2097, 8
        %s2099 = scalar_lea.vmem %s4, %s2098
        // Predicated region
        $region71: #{tpu_custom_call.1} parent=65 // pred_check
          %p2100 = pneg %p107
        $region72: #{tpu_custom_call.1} parent=65 // pred_check_branch
          %2102 = sbr.rel (%p2100) target = $region74
        $region73: #{tpu_custom_call.1} parent=65 // pred_region
          %s2103 = smul.u32 4, %s21
        $region74: #{tpu_custom_call.1} parent=65 // pred_fallthru
          _
      $region66: #{tpu_custom_call.1} parent=5 // pred_fallthru
        _
      %p2104 = scmp.le.s32.totalorder 2, %s16
      // Predicated region
      $region75: #{tpu_custom_call.1} parent=5 // pred_check
        %p2105 = pneg %p2104
      $region76: #{tpu_custom_call.1} parent=5 // pred_check_branch
        %2107 = sbr.rel (%p2105) target = $region78
      $region77: #{tpu_custom_call.1} parent=5 // pred_region
        %s2108 = ssub.s32 %s16, 2
        // Predicated region
        $region79: #{tpu_custom_call.1} parent=77 // pred_check
          %p2109 = pneg %p113
        $region80: #{tpu_custom_call.1} parent=77 // pred_check_branch
          %2111 = sbr.rel (%p2109) target = $region82
        $region81: #{tpu_custom_call.1} parent=77 // pred_region
          %s2112 = smul.u32 4, %s22
          %p2113 = scmp.lt.s32.totalorder %s2112, 7
          %s2114 = scalar_select %p2113, %s2112, 7
          %s2115 = smul.addr %s2114, 8
          %s2116 = scalar_lea.vmem %s4, %s2115
        $region82: #{tpu_custom_call.1} parent=77 // pred_fallthru
          _
      $region78: #{tpu_custom_call.1} parent=5 // pred_fallthru
        _
    $region6: #{tpu_custom_call.1} parent=1 // loop_footer
      %s20 = sadd.s32 1, %s16
    $region7: #{tpu_custom_call.1} parent=1 // loop_footer_branch
      %15 = sbr.rel target = $region3
    $region8: #{tpu_custom_call.1} parent=1 // loop_exit
      _

</llo_original>
